<compile_context>
chip_gen: v7x
topology: tpu7x:2x2x1
jax: 0.10.0
libtpu: 0.0.40
codegen_flags: <defaults>
</compile_context>

<pallas_src>
import math

import jax
import jax.numpy as jnp
from jax.experimental import pallas as pl
from jax.experimental.pallas import tpu as pltpu


def _leaky_relu(x):
    # one VALU op instead of cmp+select
    return jnp.maximum(x, 0.2 * x)


# ----------------------------------------------------------------------------
# Fused two-stage DiscConv kernel
# ----------------------------------------------------------------------------
def _make_discconv_kernel(H, W):
    HW = H * W
    # Lane padding on each side of the flattened spatial axis; >= W+1 so every
    # 3x3 tap shift stays inside the buffer, rounded up to 128 so the central
    # store is lane-aligned.
    PAD = ((W + 1 + 127) // 128) * 128

    def conv3x3(buf_ref, w_ref, b_ref, m_left, m_right):
        """Channel-major 3x3 SAME conv.

        buf_ref: (C, HW + 2*PAD) zero-padded VMEM slab holding the activation
                 at lanes [PAD, PAD+HW).
        w_ref:   (9, Cout, C) per-tap weights, tap t = dy*3 + dx.
        b_ref:   (Cout, 1) bias.
        returns  (Cout, HW) float32.
        """
        acc = None
        for dy in range(3):
            for dx in range(3):
                t = dy * 3 + dx
                s = (dy - 1) * W + (dx - 1)
                # shifted view: sl[c, p] = x[c, p + s]  (zero inside the padding,
                # which also handles the vertical image boundary)
                sl = buf_ref[:, pl.ds(PAD + s, HW)]
                if dx == 0:        # reads column w-1: invalid where w == 0
                    sl = sl * m_left
                elif dx == 2:      # reads column w+1: invalid where w == W-1
                    sl = sl * m_right
                part = jnp.dot(w_ref[t], sl, preferred_element_type=jnp.float32)
                acc = part if acc is None else acc + part
        return acc + b_ref[...]    # (Cout, 1) broadcast over the HW lanes

    def kernel(x_ref, w1_ref, b1_ref, w2_ref, b2_ref, out_ref, xbuf, ybuf):
        # Horizontal-boundary masks for the +/-1 column taps (vertical
        # boundaries are covered by the zero padding of the flattened buffer).
        wcol = jax.lax.broadcasted_iota(jnp.int32, (1, HW), 1) % W
        m_left = (wcol > 0).astype(jnp.float32)
        m_right = (wcol < W - 1).astype(jnp.float32)

        # ---- stage 1: conv1 + bias + LeakyReLU(0.2); result stays in VMEM ----
        xbuf[...] = jnp.zeros_like(xbuf)
        xbuf[:, pl.ds(PAD, HW)] = x_ref[0]
        y1 = _leaky_relu(conv3x3(xbuf, w1_ref, b1_ref, m_left, m_right))

        # ---- stage 2: conv2 + bias + LeakyReLU(0.2) ----
        ybuf[...] = jnp.zeros_like(ybuf)
        ybuf[:, pl.ds(PAD, HW)] = y1
        y2 = _leaky_relu(conv3x3(ybuf, w2_ref, b2_ref, m_left, m_right))

        out_ref[0] = y2.astype(out_ref.dtype)

    return kernel, PAD


def discconv_forward(x_nchw, params):
    B, Cin, H, W = x_nchw.shape
    Cout = params["w1"].shape[1]
    HW = H * W
    kernel, PAD = _make_discconv_kernel(H, W)

    x = x_nchw.reshape(B, Cin, HW)          # NCHW is already channel-major

    # TODO(synk): for large H*W*C, tile H into the grid (recomputing a 1-row halo
    # of the conv1 activation per tile) so per-batch slabs respect v7x's 64 MiB VMEM.
    # TODO(synk): optionally cast matmul operands to bf16 on v6e/v7x for MXU
    # throughput; kept f32 here for exact parity with the f32 reference.
    out = pl.pallas_call(
        kernel,
        out_shape=jax.ShapeDtypeStruct((B, Cout, HW), jnp.float32),
        grid_spec=pltpu.PrefetchScalarGridSpec(
            num_scalar_prefetch=0,
            grid=(B,),
            in_specs=[
                pl.BlockSpec((1, Cin, HW), lambda i: (i, 0, 0)),     # input slab
                pl.BlockSpec((9, Cout, Cin), lambda i: (0, 0, 0)),   # conv1 taps
                pl.BlockSpec((Cout, 1), lambda i: (0, 0)),           # conv1 bias
                pl.BlockSpec((9, Cout, Cout), lambda i: (0, 0, 0)),  # conv2 taps
                pl.BlockSpec((Cout, 1), lambda i: (0, 0)),           # conv2 bias
            ],
            out_specs=pl.BlockSpec((1, Cout, HW), lambda i: (i, 0, 0)),
            scratch_shapes=[
                pltpu.VMEM((Cin, HW + 2 * PAD), jnp.float32),   # padded input
                pltpu.VMEM((Cout, HW + 2 * PAD), jnp.float32),  # padded conv1 act
            ],
        ),
        compiler_params=pltpu.CompilerParams(
            dimension_semantics=("parallel",),        # B>=2 feeds both v7x TCs
            vmem_limit_bytes=32 * 1024 * 1024,
        ),
    )(x, params["w1"], params["b1"], params["w2"], params["b2"])
    return out.reshape(B, Cout, H, W)


# ----------------------------------------------------------------------------
# Deterministic parameter init (shapes per DiscConv.__init__, equal_lr pre-applied)
# ----------------------------------------------------------------------------
def init_params(key, Cin, Cout, k=3):
    k1, k2, k3, k4 = jax.random.split(key, 4)

    def conv_weight(kk, cin, cout):
        w = jax.random.normal(kk, (cout, cin, k, k), jnp.float32)   # .normal_()
        w = w * math.sqrt(2.0 / (cin * k * k))                      # equal_lr scale
        # -> per-tap matmul layout (9, Cout, Cin), tap t = ky*3 + kx
        return jnp.transpose(w, (2, 3, 0, 1)).reshape(k * k, cout, cin)

    return {
        "w1": conv_weight(k1, Cin, Cout),
        # PyTorch zero-inits the conv bias; small random values here so the
        # bias-add path of the forward pass is actually exercised by the check.
        "b1": 0.1 * jax.random.normal(k2, (Cout, 1), jnp.float32),
        "w2": conv_weight(k3, Cout, Cout),
        "b2": 0.1 * jax.random.normal(k4, (Cout, 1), jnp.float32),
    }


# ----------------------------------------------------------------------------
# Pure-JAX reference (mirrors the PyTorch forward) for a correctness check
# ----------------------------------------------------------------------------
def reference_forward(x_nchw, params):
    def stage(x, w_t, b):
        _, Cout, Cin_ = w_t.shape
        w_oihw = jnp.transpose(w_t.reshape(3, 3, Cout, Cin_), (2, 3, 0, 1))
        y = jax.lax.conv_general_dilated(
            x, w_oihw, window_strides=(1, 1), padding=((1, 1), (1, 1)),
            dimension_numbers=("NCHW", "OIHW", "NCHW"))
        y = y + b.reshape(1, Cout, 1, 1)
        return jnp.maximum(y, 0.2 * y)

    y = stage(x_nchw, params["w1"], params["b1"])
    y = stage(y, params["w2"], params["b2"])
    return y


if __name__ == "__main__":
    B, Cin, Cout, H, W = 2, 4, 8, 16, 16

    key = jax.random.PRNGKey(0)
    kx, kp = jax.random.split(key)
    x = jax.random.normal(kx, (B, Cin, H, W), jnp.float32)
    params = init_params(kp, Cin, Cout)

    out = jax.block_until_ready(discconv_forward(x, params))
    assert out.shape == (B, Cout, H, W), out.shape

    ref = reference_forward(x, params)
    err = float(jnp.max(jnp.abs(out - ref)))
    if err < 1e-3:
        print("KERNEL_OK")
    else:
        print("MISMATCH max_abs_err=", err)
</pallas_src>

<mosaic_0001>
module attributes {stable_mosaic.version = 11 : i64} {
  func.func @kernel(%arg0: i32, %arg1: memref<1x4x256xf32, #tpu.memory_space<vmem>>, %arg2: memref<9x8x4xf32, #tpu.memory_space<vmem>>, %arg3: memref<8x1xf32, #tpu.memory_space<vmem>>, %arg4: memref<9x8x8xf32, #tpu.memory_space<vmem>>, %arg5: memref<8x1xf32, #tpu.memory_space<vmem>>, %arg6: memref<1x8x256xf32, #tpu.memory_space<vmem>>, %arg7: memref<4x512xf32, #tpu.memory_space<vmem>>, %arg8: memref<8x512xf32, #tpu.memory_space<vmem>>) attributes {dimension_semantics = [#tpu.dimension_semantics<parallel>], iteration_bounds = array<i64: 2>, scalar_prefetch = 0 : i64, scratch_operands = 2 : i64, tpu.core_type = #tpu.core_type<tc>, window_params = [{transform_indices = @transform_0, window_bounds = array<i64: 1, 4, 256>}, {pipeline_mode = #tpu.pipeline_mode<synchronous>, transform_indices = @transform_1, window_bounds = array<i64: 9, 8, 4>}, {pipeline_mode = #tpu.pipeline_mode<synchronous>, transform_indices = @transform_2, window_bounds = array<i64: 8, 1>}, {pipeline_mode = #tpu.pipeline_mode<synchronous>, transform_indices = @transform_3, window_bounds = array<i64: 9, 8, 8>}, {pipeline_mode = #tpu.pipeline_mode<synchronous>, transform_indices = @transform_4, window_bounds = array<i64: 8, 1>}, {transform_indices = @transform_5, window_bounds = array<i64: 1, 8, 256>}]} {
    %0 = tpu.iota {dimensions = array<i32: 1>} : vector<1x256xi32>
    %c16_i32 = arith.constant 16 : i32
    %c0_i32 = arith.constant 0 : i32
    %1 = arith.cmpi eq, %c16_i32, %c0_i32 : i32
    %c1_i32 = arith.constant 1 : i32
    %2 = arith.select %1, %c1_i32, %c16_i32 : i32
    %3 = vector.broadcast %2 : i32 to vector<1x256xi32>
    %4 = arith.remsi %0, %3 : vector<1x256xi32>
    %c0_i32_0 = arith.constant 0 : i32
    %5 = vector.broadcast %c0_i32_0 : i32 to vector<1x256xi32>
    %6 = arith.cmpi ne, %4, %5 : vector<1x256xi32>
    %c0_i32_1 = arith.constant 0 : i32
    %7 = vector.broadcast %c0_i32_1 : i32 to vector<1x256xi32>
    %8 = arith.cmpi slt, %4, %7 : vector<1x256xi32>
    %c0_i32_2 = arith.constant 0 : i32
    %9 = arith.cmpi slt, %2, %c0_i32_2 : i32
    %10 = vector.broadcast %9 : i1 to vector<1x256xi1>
    %11 = vector.broadcast %10 : vector<1x256xi1> to vector<1x256xi1>
    %12 = arith.xori %8, %11 : vector<1x256xi1>
    %13 = arith.andi %12, %6 : vector<1x256xi1>
    %14 = vector.broadcast %2 : i32 to vector<1x256xi32>
    %15 = arith.addi %4, %14 : vector<1x256xi32>
    %16 = arith.select %13, %15, %4 : vector<1x256xi1>, vector<1x256xi32>
    %c0_i32_3 = arith.constant 0 : i32
    %17 = vector.broadcast %c0_i32_3 : i32 to vector<1x256xi32>
    %18 = arith.cmpi sgt, %16, %17 : vector<1x256xi32>
    %19 = arith.extui %18 : vector<1x256xi1> to vector<1x256xi32>
    %20 = arith.sitofp %19 : vector<1x256xi32> to vector<1x256xf32>
    %c15_i32 = arith.constant 15 : i32
    %21 = vector.broadcast %c15_i32 : i32 to vector<1x256xi32>
    %22 = arith.cmpi slt, %16, %21 : vector<1x256xi32>
    %23 = arith.extui %22 : vector<1x256xi1> to vector<1x256xi32>
    %24 = arith.sitofp %23 : vector<1x256xi32> to vector<1x256xf32>
    %cst = arith.constant 0.000000e+00 : f32
    %25 = vector.broadcast %cst : f32 to vector<4x512xf32>
    %c0 = arith.constant 0 : index
    %c0_4 = arith.constant 0 : index
    %26 = vector.load %arg7[%c0, %c0_4] : memref<4x512xf32, #tpu.memory_space<vmem>>, vector<4x512xf32>
    tpu.vector_store %arg7[%c0, %c0_4], %25 {strides = array<i32>} : memref<4x512xf32, #tpu.memory_space<vmem>>, vector<4x512xf32>,
    %c0_5 = arith.constant 0 : index
    %c0_6 = arith.constant 0 : index
    %c0_7 = arith.constant 0 : index
    %27 = vector.load %arg1[%c0_5, %c0_6, %c0_7] : memref<1x4x256xf32, #tpu.memory_space<vmem>>, vector<1x4x256xf32>
    %28 = vector.shape_cast %27 : vector<1x4x256xf32> to vector<4x256xf32>
    %c0_8 = arith.constant 0 : index
    %c128 = arith.constant 128 : index
    %29 = vector.load %arg7[%c0_8, %c128] : memref<4x512xf32, #tpu.memory_space<vmem>>, vector<4x256xf32>
    tpu.vector_store %arg7[%c0_8, %c128], %28 {strides = array<i32>} : memref<4x512xf32, #tpu.memory_space<vmem>>, vector<4x256xf32>,
    %c0_9 = arith.constant 0 : index
    %c111 = arith.constant 111 : index
    %30 = vector.load %arg7[%c0_9, %c111] : memref<4x512xf32, #tpu.memory_space<vmem>>, vector<4x256xf32>
    %31 = vector.broadcast %20 : vector<1x256xf32> to vector<4x256xf32>
    %32 = arith.mulf %30, %31 : vector<4x256xf32>
    %c0_10 = arith.constant 0 : index
    %c0_11 = arith.constant 0 : index
    %c0_12 = arith.constant 0 : index
    %33 = vector.load %arg2[%c0_10, %c0_11, %c0_12] : memref<9x8x4xf32, #tpu.memory_space<vmem>>, vector<1x8x4xf32>
    %34 = vector.shape_cast %33 : vector<1x8x4xf32> to vector<8x4xf32>
    %cst_13 = arith.constant dense<0.000000e+00> : vector<8x256xf32>
    %35 = tpu.matmul %34, %32, %cst_13 {dimension_numbers = #tpu.dot_dimension_numbers<[1], [0], [0], [1], [0, 0, 1, 1], [], []>} : vector<8x4xf32>, vector<4x256xf32>, vector<8x256xf32> -> vector<8x256xf32>
    %c0_14 = arith.constant 0 : index
    %c112 = arith.constant 112 : index
    %36 = vector.load %arg7[%c0_14, %c112] : memref<4x512xf32, #tpu.memory_space<vmem>>, vector<4x256xf32>
    %c1 = arith.constant 1 : index
    %c0_15 = arith.constant 0 : index
    %c0_16 = arith.constant 0 : index
    %37 = vector.load %arg2[%c1, %c0_15, %c0_16] : memref<9x8x4xf32, #tpu.memory_space<vmem>>, vector<1x8x4xf32>
    %38 = vector.shape_cast %37 : vector<1x8x4xf32> to vector<8x4xf32>
    %cst_17 = arith.constant dense<0.000000e+00> : vector<8x256xf32>
    %39 = tpu.matmul %38, %36, %cst_17 {dimension_numbers = #tpu.dot_dimension_numbers<[1], [0], [0], [1], [0, 0, 1, 1], [], []>} : vector<8x4xf32>, vector<4x256xf32>, vector<8x256xf32> -> vector<8x256xf32>
    %40 = arith.addf %35, %39 : vector<8x256xf32>
    %c0_18 = arith.constant 0 : index
    %c113 = arith.constant 113 : index
    %41 = vector.load %arg7[%c0_18, %c113] : memref<4x512xf32, #tpu.memory_space<vmem>>, vector<4x256xf32>
    %42 = vector.broadcast %24 : vector<1x256xf32> to vector<4x256xf32>
    %43 = arith.mulf %41, %42 : vector<4x256xf32>
    %c2 = arith.constant 2 : index
    %c0_19 = arith.constant 0 : index
    %c0_20 = arith.constant 0 : index
    %44 = vector.load %arg2[%c2, %c0_19, %c0_20] : memref<9x8x4xf32, #tpu.memory_space<vmem>>, vector<1x8x4xf32>
    %45 = vector.shape_cast %44 : vector<1x8x4xf32> to vector<8x4xf32>
    %cst_21 = arith.constant dense<0.000000e+00> : vector<8x256xf32>
    %46 = tpu.matmul %45, %43, %cst_21 {dimension_numbers = #tpu.dot_dimension_numbers<[1], [0], [0], [1], [0, 0, 1, 1], [], []>} : vector<8x4xf32>, vector<4x256xf32>, vector<8x256xf32> -> vector<8x256xf32>
    %47 = arith.addf %40, %46 : vector<8x256xf32>
    %c0_22 = arith.constant 0 : index
    %c127 = arith.constant 127 : index
    %48 = vector.load %arg7[%c0_22, %c127] : memref<4x512xf32, #tpu.memory_space<vmem>>, vector<4x256xf32>
    %49 = vector.broadcast %20 : vector<1x256xf32> to vector<4x256xf32>
    %50 = arith.mulf %48, %49 : vector<4x256xf32>
    %c3 = arith.constant 3 : index
    %c0_23 = arith.constant 0 : index
    %c0_24 = arith.constant 0 : index
    %51 = vector.load %arg2[%c3, %c0_23, %c0_24] : memref<9x8x4xf32, #tpu.memory_space<vmem>>, vector<1x8x4xf32>
    %52 = vector.shape_cast %51 : vector<1x8x4xf32> to vector<8x4xf32>
    %cst_25 = arith.constant dense<0.000000e+00> : vector<8x256xf32>
    %53 = tpu.matmul %52, %50, %cst_25 {dimension_numbers = #tpu.dot_dimension_numbers<[1], [0], [0], [1], [0, 0, 1, 1], [], []>} : vector<8x4xf32>, vector<4x256xf32>, vector<8x256xf32> -> vector<8x256xf32>
    %54 = arith.addf %47, %53 : vector<8x256xf32>
    %c0_26 = arith.constant 0 : index
    %c128_27 = arith.constant 128 : index
    %55 = vector.load %arg7[%c0_26, %c128_27] : memref<4x512xf32, #tpu.memory_space<vmem>>, vector<4x256xf32>
    %c4 = arith.constant 4 : index
    %c0_28 = arith.constant 0 : index
    %c0_29 = arith.constant 0 : index
    %56 = vector.load %arg2[%c4, %c0_28, %c0_29] : memref<9x8x4xf32, #tpu.memory_space<vmem>>, vector<1x8x4xf32>
    %57 = vector.shape_cast %56 : vector<1x8x4xf32> to vector<8x4xf32>
    %cst_30 = arith.constant dense<0.000000e+00> : vector<8x256xf32>
    %58 = tpu.matmul %57, %55, %cst_30 {dimension_numbers = #tpu.dot_dimension_numbers<[1], [0], [0], [1], [0, 0, 1, 1], [], []>} : vector<8x4xf32>, vector<4x256xf32>, vector<8x256xf32> -> vector<8x256xf32>
    %59 = arith.addf %54, %58 : vector<8x256xf32>
    %c0_31 = arith.constant 0 : index
    %c129 = arith.constant 129 : index
    %60 = vector.load %arg7[%c0_31, %c129] : memref<4x512xf32, #tpu.memory_space<vmem>>, vector<4x256xf32>
    %61 = vector.broadcast %24 : vector<1x256xf32> to vector<4x256xf32>
    %62 = arith.mulf %60, %61 : vector<4x256xf32>
    %c5 = arith.constant 5 : index
    %c0_32 = arith.constant 0 : index
    %c0_33 = arith.constant 0 : index
    %63 = vector.load %arg2[%c5, %c0_32, %c0_33] : memref<9x8x4xf32, #tpu.memory_space<vmem>>, vector<1x8x4xf32>
    %64 = vector.shape_cast %63 : vector<1x8x4xf32> to vector<8x4xf32>
    %cst_34 = arith.constant dense<0.000000e+00> : vector<8x256xf32>
    %65 = tpu.matmul %64, %62, %cst_34 {dimension_numbers = #tpu.dot_dimension_numbers<[1], [0], [0], [1], [0, 0, 1, 1], [], []>} : vector<8x4xf32>, vector<4x256xf32>, vector<8x256xf32> -> vector<8x256xf32>
    %66 = arith.addf %59, %65 : vector<8x256xf32>
    %c0_35 = arith.constant 0 : index
    %c143 = arith.constant 143 : index
    %67 = vector.load %arg7[%c0_35, %c143] : memref<4x512xf32, #tpu.memory_space<vmem>>, vector<4x256xf32>
    %68 = vector.broadcast %20 : vector<1x256xf32> to vector<4x256xf32>
    %69 = arith.mulf %67, %68 : vector<4x256xf32>
    %c6 = arith.constant 6 : index
    %c0_36 = arith.constant 0 : index
    %c0_37 = arith.constant 0 : index
    %70 = vector.load %arg2[%c6, %c0_36, %c0_37] : memref<9x8x4xf32, #tpu.memory_space<vmem>>, vector<1x8x4xf32>
    %71 = vector.shape_cast %70 : vector<1x8x4xf32> to vector<8x4xf32>
    %cst_38 = arith.constant dense<0.000000e+00> : vector<8x256xf32>
    %72 = tpu.matmul %71, %69, %cst_38 {dimension_numbers = #tpu.dot_dimension_numbers<[1], [0], [0], [1], [0, 0, 1, 1], [], []>} : vector<8x4xf32>, vector<4x256xf32>, vector<8x256xf32> -> vector<8x256xf32>
    %73 = arith.addf %66, %72 : vector<8x256xf32>
    %c0_39 = arith.constant 0 : index
    %c144 = arith.constant 144 : index
    %74 = vector.load %arg7[%c0_39, %c144] : memref<4x512xf32, #tpu.memory_space<vmem>>, vector<4x256xf32>
    %c7 = arith.constant 7 : index
    %c0_40 = arith.constant 0 : index
    %c0_41 = arith.constant 0 : index
    %75 = vector.load %arg2[%c7, %c0_40, %c0_41] : memref<9x8x4xf32, #tpu.memory_space<vmem>>, vector<1x8x4xf32>
    %76 = vector.shape_cast %75 : vector<1x8x4xf32> to vector<8x4xf32>
    %cst_42 = arith.constant dense<0.000000e+00> : vector<8x256xf32>
    %77 = tpu.matmul %76, %74, %cst_42 {dimension_numbers = #tpu.dot_dimension_numbers<[1], [0], [0], [1], [0, 0, 1, 1], [], []>} : vector<8x4xf32>, vector<4x256xf32>, vector<8x256xf32> -> vector<8x256xf32>
    %78 = arith.addf %73, %77 : vector<8x256xf32>
    %c0_43 = arith.constant 0 : index
    %c145 = arith.constant 145 : index
    %79 = vector.load %arg7[%c0_43, %c145] : memref<4x512xf32, #tpu.memory_space<vmem>>, vector<4x256xf32>
    %80 = vector.broadcast %24 : vector<1x256xf32> to vector<4x256xf32>
    %81 = arith.mulf %79, %80 : vector<4x256xf32>
    %c8 = arith.constant 8 : index
    %c0_44 = arith.constant 0 : index
    %c0_45 = arith.constant 0 : index
    %82 = vector.load %arg2[%c8, %c0_44, %c0_45] : memref<9x8x4xf32, #tpu.memory_space<vmem>>, vector<1x8x4xf32>
    %83 = vector.shape_cast %82 : vector<1x8x4xf32> to vector<8x4xf32>
    %cst_46 = arith.constant dense<0.000000e+00> : vector<8x256xf32>
    %84 = tpu.matmul %83, %81, %cst_46 {dimension_numbers = #tpu.dot_dimension_numbers<[1], [0], [0], [1], [0, 0, 1, 1], [], []>} : vector<8x4xf32>, vector<4x256xf32>, vector<8x256xf32> -> vector<8x256xf32>
    %85 = arith.addf %78, %84 : vector<8x256xf32>
    %c0_47 = arith.constant 0 : index
    %c0_48 = arith.constant 0 : index
    %86 = vector.load %arg3[%c0_47, %c0_48] : memref<8x1xf32, #tpu.memory_space<vmem>>, vector<8x1xf32>
    %87 = vector.broadcast %86 : vector<8x1xf32> to vector<8x256xf32>
    %88 = arith.addf %85, %87 : vector<8x256xf32>
    %cst_49 = arith.constant 2.000000e-01 : f32
    %89 = vector.broadcast %cst_49 : f32 to vector<8x256xf32>
    %90 = arith.mulf %89, %88 : vector<8x256xf32>
    %91 = arith.maximumf %88, %90 : vector<8x256xf32>
    %cst_50 = arith.constant 0.000000e+00 : f32
    %92 = vector.broadcast %cst_50 : f32 to vector<8x512xf32>
    %c0_51 = arith.constant 0 : index
    %c0_52 = arith.constant 0 : index
    %93 = vector.load %arg8[%c0_51, %c0_52] : memref<8x512xf32, #tpu.memory_space<vmem>>, vector<8x512xf32>
    tpu.vector_store %arg8[%c0_51, %c0_52], %92 {strides = array<i32>} : memref<8x512xf32, #tpu.memory_space<vmem>>, vector<8x512xf32>,
    %c0_53 = arith.constant 0 : index
    %c128_54 = arith.constant 128 : index
    %94 = vector.load %arg8[%c0_53, %c128_54] : memref<8x512xf32, #tpu.memory_space<vmem>>, vector<8x256xf32>
    tpu.vector_store %arg8[%c0_53, %c128_54], %91 {strides = array<i32>} : memref<8x512xf32, #tpu.memory_space<vmem>>, vector<8x256xf32>,
    %c0_55 = arith.constant 0 : index
    %c111_56 = arith.constant 111 : index
    %95 = vector.load %arg8[%c0_55, %c111_56] : memref<8x512xf32, #tpu.memory_space<vmem>>, vector<8x256xf32>
    %96 = vector.broadcast %20 : vector<1x256xf32> to vector<8x256xf32>
    %97 = arith.mulf %95, %96 : vector<8x256xf32>
    %c0_57 = arith.constant 0 : index
    %c0_58 = arith.constant 0 : index
    %c0_59 = arith.constant 0 : index
    %98 = vector.load %arg4[%c0_57, %c0_58, %c0_59] : memref<9x8x8xf32, #tpu.memory_space<vmem>>, vector<1x8x8xf32>
    %99 = vector.shape_cast %98 : vector<1x8x8xf32> to vector<8x8xf32>
    %cst_60 = arith.constant dense<0.000000e+00> : vector<8x256xf32>
    %100 = tpu.matmul %99, %97, %cst_60 {dimension_numbers = #tpu.dot_dimension_numbers<[1], [0], [0], [1], [0, 0, 1, 1], [], []>} : vector<8x8xf32>, vector<8x256xf32>, vector<8x256xf32> -> vector<8x256xf32>
    %c0_61 = arith.constant 0 : index
    %c112_62 = arith.constant 112 : index
    %101 = vector.load %arg8[%c0_61, %c112_62] : memref<8x512xf32, #tpu.memory_space<vmem>>, vector<8x256xf32>
    %c1_63 = arith.constant 1 : index
    %c0_64 = arith.constant 0 : index
    %c0_65 = arith.constant 0 : index
    %102 = vector.load %arg4[%c1_63, %c0_64, %c0_65] : memref<9x8x8xf32, #tpu.memory_space<vmem>>, vector<1x8x8xf32>
    %103 = vector.shape_cast %102 : vector<1x8x8xf32> to vector<8x8xf32>
    %cst_66 = arith.constant dense<0.000000e+00> : vector<8x256xf32>
    %104 = tpu.matmul %103, %101, %cst_66 {dimension_numbers = #tpu.dot_dimension_numbers<[1], [0], [0], [1], [0, 0, 1, 1], [], []>} : vector<8x8xf32>, vector<8x256xf32>, vector<8x256xf32> -> vector<8x256xf32>
    %105 = arith.addf %100, %104 : vector<8x256xf32>
    %c0_67 = arith.constant 0 : index
    %c113_68 = arith.constant 113 : index
    %106 = vector.load %arg8[%c0_67, %c113_68] : memref<8x512xf32, #tpu.memory_space<vmem>>, vector<8x256xf32>
    %107 = vector.broadcast %24 : vector<1x256xf32> to vector<8x256xf32>
    %108 = arith.mulf %106, %107 : vector<8x256xf32>
    %c2_69 = arith.constant 2 : index
    %c0_70 = arith.constant 0 : index
    %c0_71 = arith.constant 0 : index
    %109 = vector.load %arg4[%c2_69, %c0_70, %c0_71] : memref<9x8x8xf32, #tpu.memory_space<vmem>>, vector<1x8x8xf32>
    %110 = vector.shape_cast %109 : vector<1x8x8xf32> to vector<8x8xf32>
    %cst_72 = arith.constant dense<0.000000e+00> : vector<8x256xf32>
    %111 = tpu.matmul %110, %108, %cst_72 {dimension_numbers = #tpu.dot_dimension_numbers<[1], [0], [0], [1], [0, 0, 1, 1], [], []>} : vector<8x8xf32>, vector<8x256xf32>, vector<8x256xf32> -> vector<8x256xf32>
    %112 = arith.addf %105, %111 : vector<8x256xf32>
    %c0_73 = arith.constant 0 : index
    %c127_74 = arith.constant 127 : index
    %113 = vector.load %arg8[%c0_73, %c127_74] : memref<8x512xf32, #tpu.memory_space<vmem>>, vector<8x256xf32>
    %114 = vector.broadcast %20 : vector<1x256xf32> to vector<8x256xf32>
    %115 = arith.mulf %113, %114 : vector<8x256xf32>
    %c3_75 = arith.constant 3 : index
    %c0_76 = arith.constant 0 : index
    %c0_77 = arith.constant 0 : index
    %116 = vector.load %arg4[%c3_75, %c0_76, %c0_77] : memref<9x8x8xf32, #tpu.memory_space<vmem>>, vector<1x8x8xf32>
    %117 = vector.shape_cast %116 : vector<1x8x8xf32> to vector<8x8xf32>
    %cst_78 = arith.constant dense<0.000000e+00> : vector<8x256xf32>
    %118 = tpu.matmul %117, %115, %cst_78 {dimension_numbers = #tpu.dot_dimension_numbers<[1], [0], [0], [1], [0, 0, 1, 1], [], []>} : vector<8x8xf32>, vector<8x256xf32>, vector<8x256xf32> -> vector<8x256xf32>
    %119 = arith.addf %112, %118 : vector<8x256xf32>
    %c0_79 = arith.constant 0 : index
    %c128_80 = arith.constant 128 : index
    %120 = vector.load %arg8[%c0_79, %c128_80] : memref<8x512xf32, #tpu.memory_space<vmem>>, vector<8x256xf32>
    %c4_81 = arith.constant 4 : index
    %c0_82 = arith.constant 0 : index
    %c0_83 = arith.constant 0 : index
    %121 = vector.load %arg4[%c4_81, %c0_82, %c0_83] : memref<9x8x8xf32, #tpu.memory_space<vmem>>, vector<1x8x8xf32>
    %122 = vector.shape_cast %121 : vector<1x8x8xf32> to vector<8x8xf32>
    %cst_84 = arith.constant dense<0.000000e+00> : vector<8x256xf32>
    %123 = tpu.matmul %122, %120, %cst_84 {dimension_numbers = #tpu.dot_dimension_numbers<[1], [0], [0], [1], [0, 0, 1, 1], [], []>} : vector<8x8xf32>, vector<8x256xf32>, vector<8x256xf32> -> vector<8x256xf32>
    %124 = arith.addf %119, %123 : vector<8x256xf32>
    %c0_85 = arith.constant 0 : index
    %c129_86 = arith.constant 129 : index
    %125 = vector.load %arg8[%c0_85, %c129_86] : memref<8x512xf32, #tpu.memory_space<vmem>>, vector<8x256xf32>
    %126 = vector.broadcast %24 : vector<1x256xf32> to vector<8x256xf32>
    %127 = arith.mulf %125, %126 : vector<8x256xf32>
    %c5_87 = arith.constant 5 : index
    %c0_88 = arith.constant 0 : index
    %c0_89 = arith.constant 0 : index
    %128 = vector.load %arg4[%c5_87, %c0_88, %c0_89] : memref<9x8x8xf32, #tpu.memory_space<vmem>>, vector<1x8x8xf32>
    %129 = vector.shape_cast %128 : vector<1x8x8xf32> to vector<8x8xf32>
    %cst_90 = arith.constant dense<0.000000e+00> : vector<8x256xf32>
    %130 = tpu.matmul %129, %127, %cst_90 {dimension_numbers = #tpu.dot_dimension_numbers<[1], [0], [0], [1], [0, 0, 1, 1], [], []>} : vector<8x8xf32>, vector<8x256xf32>, vector<8x256xf32> -> vector<8x256xf32>
    %131 = arith.addf %124, %130 : vector<8x256xf32>
    %c0_91 = arith.constant 0 : index
    %c143_92 = arith.constant 143 : index
    %132 = vector.load %arg8[%c0_91, %c143_92] : memref<8x512xf32, #tpu.memory_space<vmem>>, vector<8x256xf32>
    %133 = vector.broadcast %20 : vector<1x256xf32> to vector<8x256xf32>
    %134 = arith.mulf %132, %133 : vector<8x256xf32>
    %c6_93 = arith.constant 6 : index
    %c0_94 = arith.constant 0 : index
    %c0_95 = arith.constant 0 : index
    %135 = vector.load %arg4[%c6_93, %c0_94, %c0_95] : memref<9x8x8xf32, #tpu.memory_space<vmem>>, vector<1x8x8xf32>
    %136 = vector.shape_cast %135 : vector<1x8x8xf32> to vector<8x8xf32>
    %cst_96 = arith.constant dense<0.000000e+00> : vector<8x256xf32>
    %137 = tpu.matmul %136, %134, %cst_96 {dimension_numbers = #tpu.dot_dimension_numbers<[1], [0], [0], [1], [0, 0, 1, 1], [], []>} : vector<8x8xf32>, vector<8x256xf32>, vector<8x256xf32> -> vector<8x256xf32>
    %138 = arith.addf %131, %137 : vector<8x256xf32>
    %c0_97 = arith.constant 0 : index
    %c144_98 = arith.constant 144 : index
    %139 = vector.load %arg8[%c0_97, %c144_98] : memref<8x512xf32, #tpu.memory_space<vmem>>, vector<8x256xf32>
    %c7_99 = arith.constant 7 : index
    %c0_100 = arith.constant 0 : index
    %c0_101 = arith.constant 0 : index
    %140 = vector.load %arg4[%c7_99, %c0_100, %c0_101] : memref<9x8x8xf32, #tpu.memory_space<vmem>>, vector<1x8x8xf32>
    %141 = vector.shape_cast %140 : vector<1x8x8xf32> to vector<8x8xf32>
    %cst_102 = arith.constant dense<0.000000e+00> : vector<8x256xf32>
    %142 = tpu.matmul %141, %139, %cst_102 {dimension_numbers = #tpu.dot_dimension_numbers<[1], [0], [0], [1], [0, 0, 1, 1], [], []>} : vector<8x8xf32>, vector<8x256xf32>, vector<8x256xf32> -> vector<8x256xf32>
    %143 = arith.addf %138, %142 : vector<8x256xf32>
    %c0_103 = arith.constant 0 : index
    %c145_104 = arith.constant 145 : index
    %144 = vector.load %arg8[%c0_103, %c145_104] : memref<8x512xf32, #tpu.memory_space<vmem>>, vector<8x256xf32>
    %145 = vector.broadcast %24 : vector<1x256xf32> to vector<8x256xf32>
    %146 = arith.mulf %144, %145 : vector<8x256xf32>
    %c8_105 = arith.constant 8 : index
    %c0_106 = arith.constant 0 : index
    %c0_107 = arith.constant 0 : index
    %147 = vector.load %arg4[%c8_105, %c0_106, %c0_107] : memref<9x8x8xf32, #tpu.memory_space<vmem>>, vector<1x8x8xf32>
    %148 = vector.shape_cast %147 : vector<1x8x8xf32> to vector<8x8xf32>
    %cst_108 = arith.constant dense<0.000000e+00> : vector<8x256xf32>
    %149 = tpu.matmul %148, %146, %cst_108 {dimension_numbers = #tpu.dot_dimension_numbers<[1], [0], [0], [1], [0, 0, 1, 1], [], []>} : vector<8x8xf32>, vector<8x256xf32>, vector<8x256xf32> -> vector<8x256xf32>
    %150 = arith.addf %143, %149 : vector<8x256xf32>
    %c0_109 = arith.constant 0 : index
    %c0_110 = arith.constant 0 : index
    %151 = vector.load %arg5[%c0_109, %c0_110] : memref<8x1xf32, #tpu.memory_space<vmem>>, vector<8x1xf32>
    %152 = vector.broadcast %151 : vector<8x1xf32> to vector<8x256xf32>
    %153 = arith.addf %150, %152 : vector<8x256xf32>
    %cst_111 = arith.constant 2.000000e-01 : f32
    %154 = vector.broadcast %cst_111 : f32 to vector<8x256xf32>
    %155 = arith.mulf %154, %153 : vector<8x256xf32>
    %156 = arith.maximumf %153, %155 : vector<8x256xf32>
    %c0_112 = arith.constant 0 : index
    %c0_113 = arith.constant 0 : index
    %c0_114 = arith.constant 0 : index
    %157 = vector.load %arg6[%c0_112, %c0_113, %c0_114] : memref<1x8x256xf32, #tpu.memory_space<vmem>>, vector<1x8x256xf32>
    %158 = vector.shape_cast %157 : vector<1x8x256xf32> to vector<8x256xf32>
    %159 = vector.shape_cast %156 : vector<8x256xf32> to vector<1x8x256xf32>
    tpu.vector_store %arg6[%c0_112, %c0_113, %c0_114], %159 {strides = array<i32>} : memref<1x8x256xf32, #tpu.memory_space<vmem>>, vector<1x8x256xf32>,
    return
  }
  func.func @transform_0(%arg0: i32) -> (i32, i32, i32) {
    %c0_i32 = arith.constant 0 : i32
    %c0_i32_0 = arith.constant 0 : i32
    %c0_i32_1 = arith.constant 0 : i32
    return %arg0, %c0_i32, %c0_i32_0 : i32, i32, i32
  }
  func.func @transform_1(%arg0: i32) -> (i32, i32, i32) {
    %c0_i32 = arith.constant 0 : i32
    %c0_i32_0 = arith.constant 0 : i32
    %c0_i32_1 = arith.constant 0 : i32
    %c0_i32_2 = arith.constant 0 : i32
    return %c0_i32, %c0_i32_0, %c0_i32_1 : i32, i32, i32
  }
  func.func @transform_2(%arg0: i32) -> (i32, i32) {
    %c0_i32 = arith.constant 0 : i32
    %c0_i32_0 = arith.constant 0 : i32
    %c0_i32_1 = arith.constant 0 : i32
    return %c0_i32, %c0_i32_0 : i32, i32
  }
  func.func @transform_3(%arg0: i32) -> (i32, i32, i32) {
    %c0_i32 = arith.constant 0 : i32
    %c0_i32_0 = arith.constant 0 : i32
    %c0_i32_1 = arith.constant 0 : i32
    %c0_i32_2 = arith.constant 0 : i32
    return %c0_i32, %c0_i32_0, %c0_i32_1 : i32, i32, i32
  }
  func.func @transform_4(%arg0: i32) -> (i32, i32) {
    %c0_i32 = arith.constant 0 : i32
    %c0_i32_0 = arith.constant 0 : i32
    %c0_i32_1 = arith.constant 0 : i32
    return %c0_i32, %c0_i32_0 : i32, i32
  }
  func.func @transform_5(%arg0: i32) -> (i32, i32, i32) {
    %c0_i32 = arith.constant 0 : i32
    %c0_i32_0 = arith.constant 0 : i32
    %c0_i32_1 = arith.constant 0 : i32
    return %arg0, %c0_i32, %c0_i32_0 : i32, i32, i32
  }
}

</mosaic_0001>

<llo_original>
// kernel: tpu_custom_call.1
$region0: #{tpu_custom_call.1}
  #allocation0 [shape = 'u32[]', space=smem, size = 0x4, offset = 0x4, fixed_abs, tag = 'smem constant byte address 0x4 - core index']
  #allocation1 [shape = 'u32[144,128]{1,0:T(1,128)}', space=vmem, size = 0x12000, scoped, tag = 'internal scratch']
  #allocation2 [shape = 'f32[4,512]{1,0:T(4,128)}', space=vmem, size = 0x2000, scoped, tag = 'scratch operand']
  #allocation3 [shape = 'f32[8,512]{1,0:T(8,128)}', space=vmem, size = 0x4000, scoped, tag = 'scratch operand']
  %s0 = inlined_call_operand.vmem [shape: f32[2,4,256], index: 0, kind: input, shape index: {}]
  %s1 = inlined_call_operand.vmem [shape: f32[9,8,4], index: 1, kind: input, shape index: {}]
  %s2 = inlined_call_operand.vmem [shape: f32[8,1], index: 2, kind: input, shape index: {}]
  %s3 = inlined_call_operand.vmem [shape: f32[9,8,8], index: 3, kind: input, shape index: {}]
  %s4 = inlined_call_operand.vmem [shape: f32[8,1], index: 4, kind: input, shape index: {}]
  %s5 = inlined_call_operand.hbm [shape: f32[2,8,256], index: 5, kind: output, shape index: {}]
  %s6 = sld [smem:[#allocation0]]
  $region53: #{tpu_custom_call.1} parent=0
    _
  %s8 = ssub.s32 1, %s6
  %s9 = scalar_select 0, %s8, %s6
  $region1: #{tpu_custom_call.1} parent=0
    #allocation4 [shape = 'u8[16384]{0}', space=vmem, size = 0x4000, scoped, tag = 'output window, operand 0']
    #allocation5 [shape = 's32[2]{0}', space=sflag, size = 0x8, scoped, tag = 'scoped memory for tpu_custom_call.1']
    %10 = vsyncpa [#allocation5], 0
    %s11 = scalar_lea.sflag [#allocation5], 1
    %12 = vsyncpa %s11, 0
    loop: start=0, step=1, limit=4
    $region2: #{tpu_custom_call.1} parent=1 // loop_pre_header
      _
    $region3: #{tpu_custom_call.1} parent=1 // loop_header
      %s14 = sphi 0, %s18
      %p15 = scmp.ge.s32.totalorder %s14, 4
      %s24 = sphi 0, %s26
      %s27 = sphi 0, %s24
      %s28 = sphi 0, %s27
      %s44 = sphi 0, %s28
      %s48 = sphi 0, %s48
      %s50 = sphi 0, %s48
      %s51 = sphi 0, %s50
      %s65 = sphi 0, %s51
      %s69 = sphi 0, %s69
      %s71 = sphi 0, %s69
      %s72 = sphi 0, %s71
      %s86 = sphi 0, %s72
      %s90 = sphi 0, %s90
      %s92 = sphi 0, %s90
      %s93 = sphi 0, %s92
      %s107 = sphi 0, %s93
      %s111 = sphi 0, %s111
      %s113 = sphi 0, %s111
      %s114 = sphi 0, %s113
      %s128 = sphi 0, %s114
      %s134 = sphi 0, %s136
      %s137 = sphi 0, %s134
      %s138 = sphi 0, %s137
      %s154 = sphi 0, %s138
    $region4: #{tpu_custom_call.1} parent=1 // loop_header_branch
      %17 = sbr.rel (%p15) target = $region8
    $region5: #{tpu_custom_call.1} parent=1 // loop_body
      %s19 = ssub.s32 %s14, 1
      %s20 = ssub.s32 %s14, 2
      %s21 = sadd.s32 %s14, 1
      %s22 = ssub.s32 %s14, %s21
      %p23 = scmp.eq.s32.totalorder %s22, 0
      %s25 = sadd.s32 %s24, 1
      %s26 = scalar_select %p23, %s24, %s25
      %p29 = pneg %p23
      %p30 = scmp.eq.s32.totalorder %s14, 1
      %p31 = por %p29, %p30
      %p32 = scmp.ne.s32.totalorder %s24, %s27
      %p33 = scmp.eq.s32.totalorder %s14, 0
      %p34 = por %p32, %p33
      %p35 = scmp.ne.s32.totalorder %s24, %s27
      %p36 = scmp.eq.s32.totalorder %s19, 1
      %p37 = por %p35, %p36
      %p38 = scmp.ne.s32.totalorder %s27, %s28
      %p39 = scmp.eq.s32.totalorder %s19, 0
      %p40 = por %p38, %p39
      %p41 = scmp.ne.s32.totalorder %s27, %s28
      %p42 = scmp.eq.s32.totalorder %s20, 1
      %p43 = por %p41, %p42
      %p45 = scmp.ne.s32.totalorder %s28, %s44
      %p46 = scmp.eq.s32.totalorder %s20, 0
      %p47 = por %p45, %p46
      %s49 = sadd.s32 %s48, 1
      %p52 = scmp.eq.s32.totalorder %s14, 1
      %p53 = scmp.ne.s32.totalorder %s48, %s50
      %p54 = scmp.eq.s32.totalorder %s14, 0
      %p55 = por %p53, %p54
      %p56 = scmp.ne.s32.totalorder %s48, %s50
      %p57 = scmp.eq.s32.totalorder %s19, 1
      %p58 = por %p56, %p57
      %p59 = scmp.ne.s32.totalorder %s50, %s51
      %p60 = scmp.eq.s32.totalorder %s19, 0
      %p61 = por %p59, %p60
      %p62 = scmp.ne.s32.totalorder %s50, %s51
      %p63 = scmp.eq.s32.totalorder %s20, 1
      %p64 = por %p62, %p63
      %p66 = scmp.ne.s32.totalorder %s51, %s65
      %p67 = scmp.eq.s32.totalorder %s20, 0
      %p68 = por %p66, %p67
      %s70 = sadd.s32 %s69, 1
      %p73 = scmp.eq.s32.totalorder %s14, 1
      %p74 = scmp.ne.s32.totalorder %s69, %s71
      %p75 = scmp.eq.s32.totalorder %s14, 0
      %p76 = por %p74, %p75
      %p77 = scmp.ne.s32.totalorder %s69, %s71
      %p78 = scmp.eq.s32.totalorder %s19, 1
      %p79 = por %p77, %p78
      %p80 = scmp.ne.s32.totalorder %s71, %s72
      %p81 = scmp.eq.s32.totalorder %s19, 0
      %p82 = por %p80, %p81
      %p83 = scmp.ne.s32.totalorder %s71, %s72
      %p84 = scmp.eq.s32.totalorder %s20, 1
      %p85 = por %p83, %p84
      %p87 = scmp.ne.s32.totalorder %s72, %s86
      %p88 = scmp.eq.s32.totalorder %s20, 0
      %p89 = por %p87, %p88
      %s91 = sadd.s32 %s90, 1
      %p94 = scmp.eq.s32.totalorder %s14, 1
      %p95 = scmp.ne.s32.totalorder %s90, %s92
      %p96 = scmp.eq.s32.totalorder %s14, 0
      %p97 = por %p95, %p96
      %p98 = scmp.ne.s32.totalorder %s90, %s92
      %p99 = scmp.eq.s32.totalorder %s19, 1
      %p100 = por %p98, %p99
      %p101 = scmp.ne.s32.totalorder %s92, %s93
      %p102 = scmp.eq.s32.totalorder %s19, 0
      %p103 = por %p101, %p102
      %p104 = scmp.ne.s32.totalorder %s92, %s93
      %p105 = scmp.eq.s32.totalorder %s20, 1
      %p106 = por %p104, %p105
      %p108 = scmp.ne.s32.totalorder %s93, %s107
      %p109 = scmp.eq.s32.totalorder %s20, 0
      %p110 = por %p108, %p109
      %s112 = sadd.s32 %s111, 1
      %p115 = scmp.eq.s32.totalorder %s14, 1
      %p116 = scmp.ne.s32.totalorder %s111, %s113
      %p117 = scmp.eq.s32.totalorder %s14, 0
      %p118 = por %p116, %p117
      %p119 = scmp.ne.s32.totalorder %s111, %s113
      %p120 = scmp.eq.s32.totalorder %s19, 1
      %p121 = por %p119, %p120
      %p122 = scmp.ne.s32.totalorder %s113, %s114
      %p123 = scmp.eq.s32.totalorder %s19, 0
      %p124 = por %p122, %p123
      %p125 = scmp.ne.s32.totalorder %s113, %s114
      %p126 = scmp.eq.s32.totalorder %s20, 1
      %p127 = por %p125, %p126
      %p129 = scmp.ne.s32.totalorder %s114, %s128
      %p130 = scmp.eq.s32.totalorder %s20, 0
      %p131 = por %p129, %p130
      %s132 = ssub.s32 %s14, %s21
      %p133 = scmp.eq.s32.totalorder %s132, 0
      %s135 = sadd.s32 %s134, 1
      %s136 = scalar_select %p133, %s134, %s135
      %p139 = pneg %p133
      %p140 = scmp.eq.s32.totalorder %s14, 1
      %p141 = por %p139, %p140
      %p142 = scmp.ne.s32.totalorder %s134, %s137
      %p143 = scmp.eq.s32.totalorder %s14, 0
      %p144 = por %p142, %p143
      %p145 = scmp.ne.s32.totalorder %s134, %s137
      %p146 = scmp.eq.s32.totalorder %s19, 1
      %p147 = por %p145, %p146
      %p148 = scmp.ne.s32.totalorder %s137, %s138
      %p149 = scmp.eq.s32.totalorder %s19, 0
      %p150 = por %p148, %p149
      %p151 = scmp.ne.s32.totalorder %s137, %s138
      %p152 = scmp.eq.s32.totalorder %s20, 1
      %p153 = por %p151, %p152
      %p155 = scmp.ne.s32.totalorder %s138, %s154
      %p156 = scmp.eq.s32.totalorder %s20, 0
      %p157 = por %p155, %p156
      %p158 = scmp.le.s32.totalorder 1, %s14
      %p159 = scmp.lt.s32.totalorder %s14, 3
      %p160 = pnand %p158, %p159
      %p161 = pneg %p160
      // Predicated region
      $region9: #{tpu_custom_call.1} parent=5 // pred_check
        _
      $region10: #{tpu_custom_call.1} parent=5 // pred_check_branch
        %163 = sbr.rel (%p160) target = $region12
      $region11: #{tpu_custom_call.1} parent=5 // pred_region
        %s164 = ssub.s32 %s14, 1
        // Predicated region
        $region13: #{tpu_custom_call.1} parent=11 // pred_check
          %p165 = pneg %p61
        $region14: #{tpu_custom_call.1} parent=11 // pred_check_branch
          %167 = sbr.rel (%p165) target = $region16
        $region15: #{tpu_custom_call.1} parent=11 // pred_region
          _
        $region16: #{tpu_custom_call.1} parent=11 // pred_fallthru
          _
        // Predicated region
        $region17: #{tpu_custom_call.1} parent=11 // pred_check
          %p168 = pneg %p82
        $region18: #{tpu_custom_call.1} parent=11 // pred_check_branch
          %170 = sbr.rel (%p168) target = $region20
        $region19: #{tpu_custom_call.1} parent=11 // pred_region
          _
        $region20: #{tpu_custom_call.1} parent=11 // pred_fallthru
          _
        // Predicated region
        $region21: #{tpu_custom_call.1} parent=11 // pred_check
          %p171 = pneg %p103
        $region22: #{tpu_custom_call.1} parent=11 // pred_check_branch
          %173 = sbr.rel (%p171) target = $region24
        $region23: #{tpu_custom_call.1} parent=11 // pred_region
          _
        $region24: #{tpu_custom_call.1} parent=11 // pred_fallthru
          _
        // Predicated region
        $region25: #{tpu_custom_call.1} parent=11 // pred_check
          %p174 = pneg %p124
        $region26: #{tpu_custom_call.1} parent=11 // pred_check_branch
          %176 = sbr.rel (%p174) target = $region28
        $region27: #{tpu_custom_call.1} parent=11 // pred_region
          _
        $region28: #{tpu_custom_call.1} parent=11 // pred_fallthru
          _
      $region12: #{tpu_custom_call.1} parent=5 // pred_fallthru
        _
      %p177 = scmp.lt.s32.totalorder %s14, 2
      // Predicated region
      $region29: #{tpu_custom_call.1} parent=5 // pred_check
        %p178 = pneg %p177
      $region30: #{tpu_custom_call.1} parent=5 // pred_check_branch
        %180 = sbr.rel (%p178) target = $region32
      $region31: #{tpu_custom_call.1} parent=5 // pred_region
        // Predicated region
        $region33: #{tpu_custom_call.1} parent=31 // pred_check
          %p181 = pneg %p34
        $region34: #{tpu_custom_call.1} parent=31 // pred_check_branch
          %183 = sbr.rel (%p181) target = $region36
        $region35: #{tpu_custom_call.1} parent=31 // pred_region
          %p184 = scmp.lt.s32.totalorder %s14, 1
          %s185 = scalar_select %p184, %s14, 1
          %s186 = smul.addr %s185, 2
          %s187 = smul.addr %s186, 4
          %s188 = scalar_lea.vmem %s0, %s187
        $region36: #{tpu_custom_call.1} parent=31 // pred_fallthru
          _
      $region32: #{tpu_custom_call.1} parent=5 // pred_fallthru
        _
      %p189 = scmp.le.s32.totalorder 1, %s14
      %p190 = scmp.lt.s32.totalorder %s14, 3
      %p191 = pnand %p189, %p190
      %p192 = pneg %p191
      // Predicated region
      $region37: #{tpu_custom_call.1} parent=5 // pred_check
        _
      $region38: #{tpu_custom_call.1} parent=5 // pred_check_branch
        %194 = sbr.rel (%p191) target = $region40
      $region39: #{tpu_custom_call.1} parent=5 // pred_region
        %s195 = ssub.s32 %s14, 1
        %p196 = scmp.lt.s32.totalorder %s19, 1
        %s197 = scalar_select %p196, %s19, 1
        %s198 = smul.addr %s197, 2
        %s199 = smul.addr %s198, 4
        %s200 = scalar_lea.vmem %s0, %s199
        %p201 = pneg %p40
        %p202 = pneg %p37
        %p203 = pneg %p61
        %p204 = pneg %p58
        %p205 = pneg %p82
        %p206 = pneg %p79
        %p207 = pneg %p103
        %p208 = pneg %p100
        %p209 = pneg %p124
        %p210 = pneg %p121
        %p211 = pneg %p150
        %p212 = pneg %p147
        %s213 = sand.u32 %s137, 1
        %s214 = scalar_lea.sflag [#allocation5], %s213
        %s215 = sand.u32 %s137, 1
        %s216 = smul.addr %s215, 16
        %s217 = scalar_lea.vmem [#allocation4], %s216
        %p218 = scmp.lt.s32.totalorder %s19, 1
        %s219 = scalar_select %p218, %s19, 1
        %s220 = smul.addr %s219, 2
        %s221 = smul.addr %s220, 4
        %s222 = scalar_lea.vmem %s0, %s221
        %v223 = vlaneseq
        %v224 = vand.u32 %v223, 127
        %v225 = vadd.s32 %v224, 128
        %vm226 = vcmp.lt.s32.totalorder %v224, 0
        %v227 = vsub.s32 0, %v224
        %v228 = vsel %vm226, %v227, %v224
        %v229 = vshrl.u32 %v228, 4
        %v230 = vand.u32 %v228, 15
        %v231 = vsub.s32 0, %v230
        %v232 = vsel %vm226, %v231, %v230
        %vm233 = vcmp.lt.s32.totalorder %v225, 0
        %v234 = vsub.s32 0, %v225
        %v235 = vsel %vm233, %v234, %v225
        %v236 = vshrl.u32 %v235, 4
        %v237 = vand.u32 %v235, 15
        %v238 = vsub.s32 0, %v237
        %v239 = vsel %vm233, %v238, %v237
        %vm240 = vcmp.ne.s32.totalorder %v232, 0
        %vm241 = vcmp.ne.s32.totalorder %v239, 0
        %vm242 = vcmp.lt.s32.totalorder %v232, 0
        %vm243 = vcmp.lt.s32.totalorder %v239, 0
        %vm244 = vmand %vm242, %vm240
        %vm245 = vmand %vm243, %vm241
        %v246 = vadd.s32 %v232, 16
        %v247 = vadd.s32 %v239, 16
        %v248 = vsel %vm244, %v246, %v232
        %v249 = vsel %vm245, %v247, %v239
        %vm250 = vcmp.gt.s32.totalorder %v248, 0
        %vm251 = vcmp.gt.s32.totalorder %v249, 0
        %v252 = vsel %vm250, 1, 0
        %v253 = vsel %vm251, 1, 0
        %v254 = vcvt.s32.f32 %v252
        %v255 = vcvt.s32.f32 %v253
        %vm256 = vcmp.lt.s32.totalorder %v248, 15
        %vm257 = vcmp.lt.s32.totalorder %v249, 15
        %v258 = vsel %vm256, 1, 0
        %v259 = vsel %vm257, 1, 0
        %v260 = vcvt.s32.f32 %v258
        %v261 = vcvt.s32.f32 %v259
        %262 = vst [vmem:[#allocation2] sm:$0xff] 0.0
        %263 = vst [vmem:[#allocation2 + $0x8] sm:$0xff] 0.0
        %v264 = vld [vmem:[%s222] sm:$0xff]
        %265 = vst [vmem:[#allocation2 + $0x4] sm:$0xff] %v264
        %v266 = vld [vmem:[#allocation2] sm:$0xff]
        %v267 = vld [vmem:[#allocation2 + $0x8] sm:$0xf]
        %v270 = vcombine.low %v254, %v255
        %271 = vrot.lane.b32.xlu0 %v270, 111
        %v272 = vpop.permute.xlu0 %271
        %v273 = vrot.slane %v272, 4
        %vm274 = vcmask 908288
        %v275 = vsel %vm274, %v273, %v272
        %v278 = vmul.f32 %v266, %v275
        %v279 = vmul.f32 %v267, %v273
        %v280 = vld [vmem:[%s1] sm:$0xff]
        %s281 = scalar_lea.vmem %s1, 8
        %v282 = vld [vmem:[%s281] sm:$0xff]
        %v285 = vcombine.high %v266, %v266
        %286 = vrot.lane.b32.xlu0 %v266, 16
        %v287 = vpop.permute.xlu0 %286
        %288 = vrot.lane.b32.xlu0 %v285, 16
        %v289 = vpop.permute.xlu0 %288
        %290 = vrot.lane.b32.xlu0 %v267, 16
        %v291 = vpop.permute.xlu0 %290
        %vm292 = vcmask 130048
        %v293 = vsel %vm292, %v287, %v289
        %v294 = vsel %vm292, %v289, %v291
        %vm295 = vcmask 31744
        %v297 = vsel %vm295, %v282, 0
        %vm299 = vcmask 1043456
        %v300 = vsel %vm299, %v293, 0
        %v302 = vsel %vm299, %v294, 0
        %304 = vmatprep.subr.mxu0 %v302
        %305 = vmatpush1.msra.mxu0 %v300
        %306 = vmatprep.subr.mxu0 0.0
        %307 = vmatpush1.msra.mxu0 0.0
        %308 = vmatprep.subr.mxu0 0.0
        %309 = vmatpush1.msra.mxu0 0.0
        %310 = vmatprep.subr.mxu0 0.0
        %311 = vmatpush1.msra.mxu0 0.0
        %312 = vmatprep.subr.mxu0 0.0
        %313 = vmatpush1.msra.mxu0 0.0
        %314 = vmatprep.subr.mxu0 0.0
        %315 = vmatpush1.msra.mxu0 0.0
        %316 = vmatprep.subr.mxu0 0.0
        %317 = vmatpush1.msra.mxu0 0.0
        %318 = vmatprep.subr.mxu0 0.0
        %319 = vmatpush1.msra.mxu0 0.0
        %320 = vmatprep.subr.mxu0 0.0
        %321 = vmatpush1.msra.mxu0 0.0
        %322 = vmatprep.subr.mxu0 0.0
        %323 = vmatpush1.msra.mxu0 0.0
        %324 = vmatprep.subr.mxu0 0.0
        %325 = vmatpush1.msra.mxu0 0.0
        %326 = vmatprep.subr.mxu0 0.0
        %327 = vmatpush1.msra.mxu0 0.0
        %328 = vmatprep.subr.mxu0 0.0
        %329 = vmatpush1.msra.mxu0 0.0
        %330 = vmatprep.subr.mxu0 0.0
        %331 = vmatpush1.msra.mxu0 0.0
        %332 = vmatprep.subr.mxu0 0.0
        %333 = vmatpush1.msra.mxu0 0.0
        %334 = vmatprep.subr.mxu0 0.0
        %335 = vmatpush1.msra.mxu0 0.0
        %336 = vmatprep.subr.mxu0 0.0
        %337 = vmatpush1.msra.mxu0 0.0
        %338 = vmatprep.subr.mxu0 0.0
        %339 = vmatpush1.msra.mxu0 0.0
        %340 = vmatprep.subr.mxu0 0.0
        %341 = vmatpush1.msra.mxu0 0.0
        %342 = vmatprep.subr.mxu0 0.0
        %343 = vmatpush1.msra.mxu0 0.0
        %344 = vmatprep.subr.mxu0 0.0
        %345 = vmatpush1.msra.mxu0 0.0
        %346 = vmatprep.subr.mxu0 0.0
        %347 = vmatpush1.msra.mxu0 0.0
        %348 = vmatprep.subr.mxu0 0.0
        %349 = vmatpush1.msra.mxu0 0.0
        %350 = vmatprep.subr.mxu0 0.0
        %351 = vmatpush1.msra.mxu0 0.0
        %352 = vmatprep.subr.mxu0 0.0
        %353 = vmatpush1.msra.mxu0 0.0
        %354 = vmatprep.subr.mxu0 0.0
        %355 = vmatpush1.msra.mxu0 0.0
        %356 = vmatprep.subr.mxu0 0.0
        %357 = vmatpush1.msra.mxu0 0.0
        %358 = vmatprep.subr.mxu0 0.0
        %359 = vmatpush1.msra.mxu0 0.0
        %360 = vmatprep.subr.mxu0 0.0
        %361 = vmatpush1.msra.mxu0 0.0
        %362 = vmatprep.subr.mxu0 0.0
        %363 = vmatpush1.msra.mxu0 0.0
        %364 = vmatprep.subr.mxu0 0.0
        %365 = vmatpush1.msra.mxu0 0.0
        %366 = vmatprep.subr.mxu0 0.0
        %367 = vmatpush1.msra.mxu0 0.0
        %368 = vmatprep.mubr.f32.mxu0 0.0
        %369 = vmatmul.mubr.f32.gmra.mrb[0].mxu0 %v297
        %v370 = vpop.f32.mrb[0].mxu0
        %v371 = vadd.f32 0.0, %v370
        %v372 = vpop.f32.mrb[0].mxu0
        %v373 = vadd.f32 0.0, %v372
        %374 = vdwg.mxu0
        %v377 = vcombine.high %v278, %v278
        %378 = vrot.lane.b32.xlu0 %v278, 17
        %v379 = vpop.permute.xlu0 %378
        %380 = vrot.lane.b32.xlu0 %v377, 17
        %v381 = vpop.permute.xlu0 %380
        %382 = vrot.lane.b32.xlu0 %v279, 17
        %v383 = vpop.permute.xlu0 %382
        %vm384 = vcmask 138240
        %v385 = vsel %vm384, %v379, %v381
        %v386 = vsel %vm384, %v381, %v383
        %v388 = vsel %vm295, %v280, 0
        %v390 = vsel %vm299, %v385, 0
        %v392 = vsel %vm299, %v386, 0
        %394 = vmatprep.subr.mxu0 %v392
        %395 = vmatpush1.msra.mxu0 %v390
        %396 = vmatprep.subr.mxu0 0.0
        %397 = vmatpush1.msra.mxu0 0.0
        %398 = vmatprep.subr.mxu0 0.0
        %399 = vmatpush1.msra.mxu0 0.0
        %400 = vmatprep.subr.mxu0 0.0
        %401 = vmatpush1.msra.mxu0 0.0
        %402 = vmatprep.subr.mxu0 0.0
        %403 = vmatpush1.msra.mxu0 0.0
        %404 = vmatprep.subr.mxu0 0.0
        %405 = vmatpush1.msra.mxu0 0.0
        %406 = vmatprep.subr.mxu0 0.0
        %407 = vmatpush1.msra.mxu0 0.0
        %408 = vmatprep.subr.mxu0 0.0
        %409 = vmatpush1.msra.mxu0 0.0
        %410 = vmatprep.subr.mxu0 0.0
        %411 = vmatpush1.msra.mxu0 0.0
        %412 = vmatprep.subr.mxu0 0.0
        %413 = vmatpush1.msra.mxu0 0.0
        %414 = vmatprep.subr.mxu0 0.0
        %415 = vmatpush1.msra.mxu0 0.0
        %416 = vmatprep.subr.mxu0 0.0
        %417 = vmatpush1.msra.mxu0 0.0
        %418 = vmatprep.subr.mxu0 0.0
        %419 = vmatpush1.msra.mxu0 0.0
        %420 = vmatprep.subr.mxu0 0.0
        %421 = vmatpush1.msra.mxu0 0.0
        %422 = vmatprep.subr.mxu0 0.0
        %423 = vmatpush1.msra.mxu0 0.0
        %424 = vmatprep.subr.mxu0 0.0
        %425 = vmatpush1.msra.mxu0 0.0
        %426 = vmatprep.subr.mxu0 0.0
        %427 = vmatpush1.msra.mxu0 0.0
        %428 = vmatprep.subr.mxu0 0.0
        %429 = vmatpush1.msra.mxu0 0.0
        %430 = vmatprep.subr.mxu0 0.0
        %431 = vmatpush1.msra.mxu0 0.0
        %432 = vmatprep.subr.mxu0 0.0
        %433 = vmatpush1.msra.mxu0 0.0
        %434 = vmatprep.subr.mxu0 0.0
        %435 = vmatpush1.msra.mxu0 0.0
        %436 = vmatprep.subr.mxu0 0.0
        %437 = vmatpush1.msra.mxu0 0.0
        %438 = vmatprep.subr.mxu0 0.0
        %439 = vmatpush1.msra.mxu0 0.0
        %440 = vmatprep.subr.mxu0 0.0
        %441 = vmatpush1.msra.mxu0 0.0
        %442 = vmatprep.subr.mxu0 0.0
        %443 = vmatpush1.msra.mxu0 0.0
        %444 = vmatprep.subr.mxu0 0.0
        %445 = vmatpush1.msra.mxu0 0.0
        %446 = vmatprep.subr.mxu0 0.0
        %447 = vmatpush1.msra.mxu0 0.0
        %448 = vmatprep.subr.mxu0 0.0
        %449 = vmatpush1.msra.mxu0 0.0
        %450 = vmatprep.subr.mxu0 0.0
        %451 = vmatpush1.msra.mxu0 0.0
        %452 = vmatprep.subr.mxu0 0.0
        %453 = vmatpush1.msra.mxu0 0.0
        %454 = vmatprep.subr.mxu0 0.0
        %455 = vmatpush1.msra.mxu0 0.0
        %456 = vmatprep.subr.mxu0 0.0
        %457 = vmatpush1.msra.mxu0 0.0
        %458 = vmatprep.mubr.f32.mxu0 0.0
        %459 = vmatmul.mubr.f32.gmra.mrb[0].mxu0 %v388
        %v460 = vpop.f32.mrb[0].mxu0
        %v461 = vadd.f32 %v371, %v460
        %v462 = vpop.f32.mrb[0].mxu0
        %v463 = vadd.f32 %v373, %v462
        %464 = vdwg.mxu0
        %v465 = vld [vmem:[#allocation2] sm:$0xff]
        %v466 = vld [vmem:[#allocation2 + $0x8] sm:$0xf]
        %v469 = vcombine.low %v260, %v261
        %470 = vrot.lane.b32.xlu0 %v469, 113
        %v471 = vpop.permute.xlu0 %470
        %v472 = vrot.slane %v471, 4
        %vm473 = vcmask 924672
        %v474 = vsel %vm473, %v472, %v471
        %v477 = vmul.f32 %v465, %v474
        %v478 = vmul.f32 %v466, %v472
        %s479 = scalar_lea.vmem %s1, 16
        %v480 = vld [vmem:[%s479] sm:$0xff]
        %v483 = vcombine.high %v477, %v477
        %484 = vrot.lane.b32.xlu0 %v477, 15
        %v485 = vpop.permute.xlu0 %484
        %486 = vrot.lane.b32.xlu0 %v483, 15
        %v487 = vpop.permute.xlu0 %486
        %488 = vrot.lane.b32.xlu0 %v478, 15
        %v489 = vpop.permute.xlu0 %488
        %vm490 = vcmask 121856
        %v491 = vsel %vm490, %v485, %v487
        %v492 = vsel %vm490, %v487, %v489
        %v494 = vsel %vm295, %v480, 0
        %v496 = vsel %vm299, %v491, 0
        %v498 = vsel %vm299, %v492, 0
        %500 = vmatprep.subr.mxu0 %v498
        %501 = vmatpush1.msra.mxu0 %v496
        %502 = vmatprep.subr.mxu0 0.0
        %503 = vmatpush1.msra.mxu0 0.0
        %504 = vmatprep.subr.mxu0 0.0
        %505 = vmatpush1.msra.mxu0 0.0
        %506 = vmatprep.subr.mxu0 0.0
        %507 = vmatpush1.msra.mxu0 0.0
        %508 = vmatprep.subr.mxu0 0.0
        %509 = vmatpush1.msra.mxu0 0.0
        %510 = vmatprep.subr.mxu0 0.0
        %511 = vmatpush1.msra.mxu0 0.0
        %512 = vmatprep.subr.mxu0 0.0
        %513 = vmatpush1.msra.mxu0 0.0
        %514 = vmatprep.subr.mxu0 0.0
        %515 = vmatpush1.msra.mxu0 0.0
        %516 = vmatprep.subr.mxu0 0.0
        %517 = vmatpush1.msra.mxu0 0.0
        %518 = vmatprep.subr.mxu0 0.0
        %519 = vmatpush1.msra.mxu0 0.0
        %520 = vmatprep.subr.mxu0 0.0
        %521 = vmatpush1.msra.mxu0 0.0
        %522 = vmatprep.subr.mxu0 0.0
        %523 = vmatpush1.msra.mxu0 0.0
        %524 = vmatprep.subr.mxu0 0.0
        %525 = vmatpush1.msra.mxu0 0.0
        %526 = vmatprep.subr.mxu0 0.0
        %527 = vmatpush1.msra.mxu0 0.0
        %528 = vmatprep.subr.mxu0 0.0
        %529 = vmatpush1.msra.mxu0 0.0
        %530 = vmatprep.subr.mxu0 0.0
        %531 = vmatpush1.msra.mxu0 0.0
        %532 = vmatprep.subr.mxu0 0.0
        %533 = vmatpush1.msra.mxu0 0.0
        %534 = vmatprep.subr.mxu0 0.0
        %535 = vmatpush1.msra.mxu0 0.0
        %536 = vmatprep.subr.mxu0 0.0
        %537 = vmatpush1.msra.mxu0 0.0
        %538 = vmatprep.subr.mxu0 0.0
        %539 = vmatpush1.msra.mxu0 0.0
        %540 = vmatprep.subr.mxu0 0.0
        %541 = vmatpush1.msra.mxu0 0.0
        %542 = vmatprep.subr.mxu0 0.0
        %543 = vmatpush1.msra.mxu0 0.0
        %544 = vmatprep.subr.mxu0 0.0
        %545 = vmatpush1.msra.mxu0 0.0
        %546 = vmatprep.subr.mxu0 0.0
        %547 = vmatpush1.msra.mxu0 0.0
        %548 = vmatprep.subr.mxu0 0.0
        %549 = vmatpush1.msra.mxu0 0.0
        %550 = vmatprep.subr.mxu0 0.0
        %551 = vmatpush1.msra.mxu0 0.0
        %552 = vmatprep.subr.mxu0 0.0
        %553 = vmatpush1.msra.mxu0 0.0
        %554 = vmatprep.subr.mxu0 0.0
        %555 = vmatpush1.msra.mxu0 0.0
        %556 = vmatprep.subr.mxu0 0.0
        %557 = vmatpush1.msra.mxu0 0.0
        %558 = vmatprep.subr.mxu0 0.0
        %559 = vmatpush1.msra.mxu0 0.0
        %560 = vmatprep.subr.mxu0 0.0
        %561 = vmatpush1.msra.mxu0 0.0
        %562 = vmatprep.subr.mxu0 0.0
        %563 = vmatpush1.msra.mxu0 0.0
        %564 = vmatprep.mubr.f32.mxu0 0.0
        %565 = vmatmul.mubr.f32.gmra.mrb[0].mxu0 %v494
        %v566 = vpop.f32.mrb[0].mxu0
        %v567 = vadd.f32 0.0, %v566
        %v568 = vpop.f32.mrb[0].mxu0
        %v569 = vadd.f32 0.0, %v568
        %570 = vdwg.mxu0
        %v571 = vadd.f32 %v461, %v567
        %v572 = vadd.f32 %v463, %v569
        %v573 = vld [vmem:[#allocation2] sm:$0xff]
        %v574 = vld [vmem:[#allocation2 + $0x8] sm:$0xf]
        %575 = vrot.lane.b32.xlu0 %v270, 127
        %v576 = vpop.permute.xlu0 %575
        %v577 = vrot.slane %v576, 4
        %vm578 = vcmask 1039360
        %v579 = vsel %vm578, %v577, %v576
        %v582 = vmul.f32 %v573, %v579
        %v583 = vmul.f32 %v574, %v577
        %s584 = scalar_lea.vmem %s1, 24
        %v585 = vld [vmem:[%s584] sm:$0xff]
        %v588 = vcombine.high %v582, %v582
        %589 = vrot.lane.b32.xlu0 %v582, 1
        %v590 = vpop.permute.xlu0 %589
        %591 = vrot.lane.b32.xlu0 %v588, 1
        %v592 = vpop.permute.xlu0 %591
        %593 = vrot.lane.b32.xlu0 %v583, 1
        %v594 = vpop.permute.xlu0 %593
        %vm595 = vcmask 7168
        %v596 = vsel %vm595, %v590, %v592
        %v597 = vsel %vm595, %v592, %v594
        %v599 = vsel %vm295, %v585, 0
        %v601 = vsel %vm299, %v596, 0
        %v603 = vsel %vm299, %v597, 0
        %605 = vmatprep.subr.mxu0 %v603
        %606 = vmatpush1.msra.mxu0 %v601
        %607 = vmatprep.subr.mxu0 0.0
        %608 = vmatpush1.msra.mxu0 0.0
        %609 = vmatprep.subr.mxu0 0.0
        %610 = vmatpush1.msra.mxu0 0.0
        %611 = vmatprep.subr.mxu0 0.0
        %612 = vmatpush1.msra.mxu0 0.0
        %613 = vmatprep.subr.mxu0 0.0
        %614 = vmatpush1.msra.mxu0 0.0
        %615 = vmatprep.subr.mxu0 0.0
        %616 = vmatpush1.msra.mxu0 0.0
        %617 = vmatprep.subr.mxu0 0.0
        %618 = vmatpush1.msra.mxu0 0.0
        %619 = vmatprep.subr.mxu0 0.0
        %620 = vmatpush1.msra.mxu0 0.0
        %621 = vmatprep.subr.mxu0 0.0
        %622 = vmatpush1.msra.mxu0 0.0
        %623 = vmatprep.subr.mxu0 0.0
        %624 = vmatpush1.msra.mxu0 0.0
        %625 = vmatprep.subr.mxu0 0.0
        %626 = vmatpush1.msra.mxu0 0.0
        %627 = vmatprep.subr.mxu0 0.0
        %628 = vmatpush1.msra.mxu0 0.0
        %629 = vmatprep.subr.mxu0 0.0
        %630 = vmatpush1.msra.mxu0 0.0
        %631 = vmatprep.subr.mxu0 0.0
        %632 = vmatpush1.msra.mxu0 0.0
        %633 = vmatprep.subr.mxu0 0.0
        %634 = vmatpush1.msra.mxu0 0.0
        %635 = vmatprep.subr.mxu0 0.0
        %636 = vmatpush1.msra.mxu0 0.0
        %637 = vmatprep.subr.mxu0 0.0
        %638 = vmatpush1.msra.mxu0 0.0
        %639 = vmatprep.subr.mxu0 0.0
        %640 = vmatpush1.msra.mxu0 0.0
        %641 = vmatprep.subr.mxu0 0.0
        %642 = vmatpush1.msra.mxu0 0.0
        %643 = vmatprep.subr.mxu0 0.0
        %644 = vmatpush1.msra.mxu0 0.0
        %645 = vmatprep.subr.mxu0 0.0
        %646 = vmatpush1.msra.mxu0 0.0
        %647 = vmatprep.subr.mxu0 0.0
        %648 = vmatpush1.msra.mxu0 0.0
        %649 = vmatprep.subr.mxu0 0.0
        %650 = vmatpush1.msra.mxu0 0.0
        %651 = vmatprep.subr.mxu0 0.0
        %652 = vmatpush1.msra.mxu0 0.0
        %653 = vmatprep.subr.mxu0 0.0
        %654 = vmatpush1.msra.mxu0 0.0
        %655 = vmatprep.subr.mxu0 0.0
        %656 = vmatpush1.msra.mxu0 0.0
        %657 = vmatprep.subr.mxu0 0.0
        %658 = vmatpush1.msra.mxu0 0.0
        %659 = vmatprep.subr.mxu0 0.0
        %660 = vmatpush1.msra.mxu0 0.0
        %661 = vmatprep.subr.mxu0 0.0
        %662 = vmatpush1.msra.mxu0 0.0
        %663 = vmatprep.subr.mxu0 0.0
        %664 = vmatpush1.msra.mxu0 0.0
        %665 = vmatprep.subr.mxu0 0.0
        %666 = vmatpush1.msra.mxu0 0.0
        %667 = vmatprep.subr.mxu0 0.0
        %668 = vmatpush1.msra.mxu0 0.0
        %669 = vmatprep.mubr.f32.mxu0 0.0
        %670 = vmatmul.mubr.f32.gmra.mrb[0].mxu0 %v599
        %v671 = vpop.f32.mrb[0].mxu0
        %v672 = vadd.f32 0.0, %v671
        %v673 = vpop.f32.mrb[0].mxu0
        %v674 = vadd.f32 0.0, %v673
        %675 = vdwg.mxu0
        %v676 = vadd.f32 %v571, %v672
        %v677 = vadd.f32 %v572, %v674
        %v678 = vld [vmem:[#allocation2 + $0x4] sm:$0xff]
        %s679 = scalar_lea.vmem %s1, 32
        %v680 = vld [vmem:[%s679] sm:$0xff]
        %v682 = vcombine.high %v678, %v678
        %v684 = vsel %vm295, %v680, 0
        %v686 = vsel %vm299, %v678, 0
        %v688 = vsel %vm299, %v682, 0
        %690 = vmatprep.subr.mxu0 %v688
        %691 = vmatpush1.msra.mxu0 %v686
        %692 = vmatprep.subr.mxu0 0.0
        %693 = vmatpush1.msra.mxu0 0.0
        %694 = vmatprep.subr.mxu0 0.0
        %695 = vmatpush1.msra.mxu0 0.0
        %696 = vmatprep.subr.mxu0 0.0
        %697 = vmatpush1.msra.mxu0 0.0
        %698 = vmatprep.subr.mxu0 0.0
        %699 = vmatpush1.msra.mxu0 0.0
        %700 = vmatprep.subr.mxu0 0.0
        %701 = vmatpush1.msra.mxu0 0.0
        %702 = vmatprep.subr.mxu0 0.0
        %703 = vmatpush1.msra.mxu0 0.0
        %704 = vmatprep.subr.mxu0 0.0
        %705 = vmatpush1.msra.mxu0 0.0
        %706 = vmatprep.subr.mxu0 0.0
        %707 = vmatpush1.msra.mxu0 0.0
        %708 = vmatprep.subr.mxu0 0.0
        %709 = vmatpush1.msra.mxu0 0.0
        %710 = vmatprep.subr.mxu0 0.0
        %711 = vmatpush1.msra.mxu0 0.0
        %712 = vmatprep.subr.mxu0 0.0
        %713 = vmatpush1.msra.mxu0 0.0
        %714 = vmatprep.subr.mxu0 0.0
        %715 = vmatpush1.msra.mxu0 0.0
        %716 = vmatprep.subr.mxu0 0.0
        %717 = vmatpush1.msra.mxu0 0.0
        %718 = vmatprep.subr.mxu0 0.0
        %719 = vmatpush1.msra.mxu0 0.0
        %720 = vmatprep.subr.mxu0 0.0
        %721 = vmatpush1.msra.mxu0 0.0
        %722 = vmatprep.subr.mxu0 0.0
        %723 = vmatpush1.msra.mxu0 0.0
        %724 = vmatprep.subr.mxu0 0.0
        %725 = vmatpush1.msra.mxu0 0.0
        %726 = vmatprep.subr.mxu0 0.0
        %727 = vmatpush1.msra.mxu0 0.0
        %728 = vmatprep.subr.mxu0 0.0
        %729 = vmatpush1.msra.mxu0 0.0
        %730 = vmatprep.subr.mxu0 0.0
        %731 = vmatpush1.msra.mxu0 0.0
        %732 = vmatprep.subr.mxu0 0.0
        %733 = vmatpush1.msra.mxu0 0.0
        %734 = vmatprep.subr.mxu0 0.0
        %735 = vmatpush1.msra.mxu0 0.0
        %736 = vmatprep.subr.mxu0 0.0
        %737 = vmatpush1.msra.mxu0 0.0
        %738 = vmatprep.subr.mxu0 0.0
        %739 = vmatpush1.msra.mxu0 0.0
        %740 = vmatprep.subr.mxu0 0.0
        %741 = vmatpush1.msra.mxu0 0.0
        %742 = vmatprep.subr.mxu0 0.0
        %743 = vmatpush1.msra.mxu0 0.0
        %744 = vmatprep.subr.mxu0 0.0
        %745 = vmatpush1.msra.mxu0 0.0
        %746 = vmatprep.subr.mxu0 0.0
        %747 = vmatpush1.msra.mxu0 0.0
        %748 = vmatprep.subr.mxu0 0.0
        %749 = vmatpush1.msra.mxu0 0.0
        %750 = vmatprep.subr.mxu0 0.0
        %751 = vmatpush1.msra.mxu0 0.0
        %752 = vmatprep.subr.mxu0 0.0
        %753 = vmatpush1.msra.mxu0 0.0
        %754 = vmatprep.mubr.f32.mxu0 0.0
        %755 = vmatmul.mubr.f32.gmra.mrb[0].mxu0 %v684
        %v756 = vpop.f32.mrb[0].mxu0
        %v757 = vadd.f32 0.0, %v756
        %v758 = vpop.f32.mrb[0].mxu0
        %v759 = vadd.f32 0.0, %v758
        %760 = vdwg.mxu0
        %v761 = vadd.f32 %v676, %v757
        %v762 = vadd.f32 %v677, %v759
        %v763 = vld [vmem:[#allocation2 + $0x4] sm:$0xff]
        %v764 = vld [vmem:[#allocation2 + $0xc] sm:$0xf]
        %765 = vrot.lane.b32.xlu0 %v469, 1
        %v766 = vpop.permute.xlu0 %765
        %v767 = vrot.slane %v766, 4
        %v768 = vsel %vm595, %v767, %v766
        %v771 = vmul.f32 %v763, %v768
        %v772 = vmul.f32 %v764, %v767
        %s773 = scalar_lea.vmem %s1, 40
        %v774 = vld [vmem:[%s773] sm:$0xff]
        %v777 = vcombine.high %v771, %v771
        %778 = vrot.lane.b32.xlu0 %v771, 127
        %v779 = vpop.permute.xlu0 %778
        %780 = vrot.lane.b32.xlu0 %v777, 127
        %v781 = vpop.permute.xlu0 %780
        %782 = vrot.lane.b32.xlu0 %v772, 127
        %v783 = vpop.permute.xlu0 %782
        %v784 = vsel %vm578, %v779, %v781
        %v785 = vsel %vm578, %v781, %v783
        %v787 = vsel %vm295, %v774, 0
        %v789 = vsel %vm299, %v784, 0
        %v791 = vsel %vm299, %v785, 0
        %793 = vmatprep.subr.mxu0 %v791
        %794 = vmatpush1.msra.mxu0 %v789
        %795 = vmatprep.subr.mxu0 0.0
        %796 = vmatpush1.msra.mxu0 0.0
        %797 = vmatprep.subr.mxu0 0.0
        %798 = vmatpush1.msra.mxu0 0.0
        %799 = vmatprep.subr.mxu0 0.0
        %800 = vmatpush1.msra.mxu0 0.0
        %801 = vmatprep.subr.mxu0 0.0
        %802 = vmatpush1.msra.mxu0 0.0
        %803 = vmatprep.subr.mxu0 0.0
        %804 = vmatpush1.msra.mxu0 0.0
        %805 = vmatprep.subr.mxu0 0.0
        %806 = vmatpush1.msra.mxu0 0.0
        %807 = vmatprep.subr.mxu0 0.0
        %808 = vmatpush1.msra.mxu0 0.0
        %809 = vmatprep.subr.mxu0 0.0
        %810 = vmatpush1.msra.mxu0 0.0
        %811 = vmatprep.subr.mxu0 0.0
        %812 = vmatpush1.msra.mxu0 0.0
        %813 = vmatprep.subr.mxu0 0.0
        %814 = vmatpush1.msra.mxu0 0.0
        %815 = vmatprep.subr.mxu0 0.0
        %816 = vmatpush1.msra.mxu0 0.0
        %817 = vmatprep.subr.mxu0 0.0
        %818 = vmatpush1.msra.mxu0 0.0
        %819 = vmatprep.subr.mxu0 0.0
        %820 = vmatpush1.msra.mxu0 0.0
        %821 = vmatprep.subr.mxu0 0.0
        %822 = vmatpush1.msra.mxu0 0.0
        %823 = vmatprep.subr.mxu0 0.0
        %824 = vmatpush1.msra.mxu0 0.0
        %825 = vmatprep.subr.mxu0 0.0
        %826 = vmatpush1.msra.mxu0 0.0
        %827 = vmatprep.subr.mxu0 0.0
        %828 = vmatpush1.msra.mxu0 0.0
        %829 = vmatprep.subr.mxu0 0.0
        %830 = vmatpush1.msra.mxu0 0.0
        %831 = vmatprep.subr.mxu0 0.0
        %832 = vmatpush1.msra.mxu0 0.0
        %833 = vmatprep.subr.mxu0 0.0
        %834 = vmatpush1.msra.mxu0 0.0
        %835 = vmatprep.subr.mxu0 0.0
        %836 = vmatpush1.msra.mxu0 0.0
        %837 = vmatprep.subr.mxu0 0.0
        %838 = vmatpush1.msra.mxu0 0.0
        %839 = vmatprep.subr.mxu0 0.0
        %840 = vmatpush1.msra.mxu0 0.0
        %841 = vmatprep.subr.mxu0 0.0
        %842 = vmatpush1.msra.mxu0 0.0
        %843 = vmatprep.subr.mxu0 0.0
        %844 = vmatpush1.msra.mxu0 0.0
        %845 = vmatprep.subr.mxu0 0.0
        %846 = vmatpush1.msra.mxu0 0.0
        %847 = vmatprep.subr.mxu0 0.0
        %848 = vmatpush1.msra.mxu0 0.0
        %849 = vmatprep.subr.mxu0 0.0
        %850 = vmatpush1.msra.mxu0 0.0
        %851 = vmatprep.subr.mxu0 0.0
        %852 = vmatpush1.msra.mxu0 0.0
        %853 = vmatprep.subr.mxu0 0.0
        %854 = vmatpush1.msra.mxu0 0.0
        %855 = vmatprep.subr.mxu0 0.0
        %856 = vmatpush1.msra.mxu0 0.0
        %857 = vmatprep.mubr.f32.mxu0 0.0
        %858 = vmatmul.mubr.f32.gmra.mrb[0].mxu0 %v787
        %v859 = vpop.f32.mrb[0].mxu0
        %v860 = vadd.f32 0.0, %v859
        %v861 = vpop.f32.mrb[0].mxu0
        %v862 = vadd.f32 0.0, %v861
        %863 = vdwg.mxu0
        %v864 = vadd.f32 %v761, %v860
        %v865 = vadd.f32 %v762, %v862
        %v866 = vld [vmem:[#allocation2 + $0x4] sm:$0xff]
        %v867 = vld [vmem:[#allocation2 + $0xc] sm:$0xf]
        %868 = vrot.lane.b32.xlu0 %v270, 15
        %v869 = vpop.permute.xlu0 %868
        %v870 = vrot.slane %v869, 4
        %v871 = vsel %vm490, %v870, %v869
        %v874 = vmul.f32 %v866, %v871
        %v875 = vmul.f32 %v867, %v870
        %s876 = scalar_lea.vmem %s1, 48
        %v877 = vld [vmem:[%s876] sm:$0xff]
        %v880 = vcombine.high %v874, %v874
        %881 = vrot.lane.b32.xlu0 %v874, 113
        %v882 = vpop.permute.xlu0 %881
        %883 = vrot.lane.b32.xlu0 %v880, 113
        %v884 = vpop.permute.xlu0 %883
        %885 = vrot.lane.b32.xlu0 %v875, 113
        %v886 = vpop.permute.xlu0 %885
        %v887 = vsel %vm473, %v882, %v884
        %v888 = vsel %vm473, %v884, %v886
        %v890 = vsel %vm295, %v877, 0
        %v892 = vsel %vm299, %v887, 0
        %v894 = vsel %vm299, %v888, 0
        %896 = vmatprep.subr.mxu0 %v894
        %897 = vmatpush1.msra.mxu0 %v892
        %898 = vmatprep.subr.mxu0 0.0
        %899 = vmatpush1.msra.mxu0 0.0
        %900 = vmatprep.subr.mxu0 0.0
        %901 = vmatpush1.msra.mxu0 0.0
        %902 = vmatprep.subr.mxu0 0.0
        %903 = vmatpush1.msra.mxu0 0.0
        %904 = vmatprep.subr.mxu0 0.0
        %905 = vmatpush1.msra.mxu0 0.0
        %906 = vmatprep.subr.mxu0 0.0
        %907 = vmatpush1.msra.mxu0 0.0
        %908 = vmatprep.subr.mxu0 0.0
        %909 = vmatpush1.msra.mxu0 0.0
        %910 = vmatprep.subr.mxu0 0.0
        %911 = vmatpush1.msra.mxu0 0.0
        %912 = vmatprep.subr.mxu0 0.0
        %913 = vmatpush1.msra.mxu0 0.0
        %914 = vmatprep.subr.mxu0 0.0
        %915 = vmatpush1.msra.mxu0 0.0
        %916 = vmatprep.subr.mxu0 0.0
        %917 = vmatpush1.msra.mxu0 0.0
        %918 = vmatprep.subr.mxu0 0.0
        %919 = vmatpush1.msra.mxu0 0.0
        %920 = vmatprep.subr.mxu0 0.0
        %921 = vmatpush1.msra.mxu0 0.0
        %922 = vmatprep.subr.mxu0 0.0
        %923 = vmatpush1.msra.mxu0 0.0
        %924 = vmatprep.subr.mxu0 0.0
        %925 = vmatpush1.msra.mxu0 0.0
        %926 = vmatprep.subr.mxu0 0.0
        %927 = vmatpush1.msra.mxu0 0.0
        %928 = vmatprep.subr.mxu0 0.0
        %929 = vmatpush1.msra.mxu0 0.0
        %930 = vmatprep.subr.mxu0 0.0
        %931 = vmatpush1.msra.mxu0 0.0
        %932 = vmatprep.subr.mxu0 0.0
        %933 = vmatpush1.msra.mxu0 0.0
        %934 = vmatprep.subr.mxu0 0.0
        %935 = vmatpush1.msra.mxu0 0.0
        %936 = vmatprep.subr.mxu0 0.0
        %937 = vmatpush1.msra.mxu0 0.0
        %938 = vmatprep.subr.mxu0 0.0
        %939 = vmatpush1.msra.mxu0 0.0
        %940 = vmatprep.subr.mxu0 0.0
        %941 = vmatpush1.msra.mxu0 0.0
        %942 = vmatprep.subr.mxu0 0.0
        %943 = vmatpush1.msra.mxu0 0.0
        %944 = vmatprep.subr.mxu0 0.0
        %945 = vmatpush1.msra.mxu0 0.0
        %946 = vmatprep.subr.mxu0 0.0
        %947 = vmatpush1.msra.mxu0 0.0
        %948 = vmatprep.subr.mxu0 0.0
        %949 = vmatpush1.msra.mxu0 0.0
        %950 = vmatprep.subr.mxu0 0.0
        %951 = vmatpush1.msra.mxu0 0.0
        %952 = vmatprep.subr.mxu0 0.0
        %953 = vmatpush1.msra.mxu0 0.0
        %954 = vmatprep.subr.mxu0 0.0
        %955 = vmatpush1.msra.mxu0 0.0
        %956 = vmatprep.subr.mxu0 0.0
        %957 = vmatpush1.msra.mxu0 0.0
        %958 = vmatprep.subr.mxu0 0.0
        %959 = vmatpush1.msra.mxu0 0.0
        %960 = vmatprep.mubr.f32.mxu0 0.0
        %961 = vmatmul.mubr.f32.gmra.mrb[0].mxu0 %v890
        %v962 = vpop.f32.mrb[0].mxu0
        %v963 = vadd.f32 0.0, %v962
        %v964 = vpop.f32.mrb[0].mxu0
        %v965 = vadd.f32 0.0, %v964
        %966 = vdwg.mxu0
        %v967 = vadd.f32 %v864, %v963
        %v968 = vadd.f32 %v865, %v965
        %v969 = vld [vmem:[#allocation2 + $0x4] sm:$0xff]
        %v970 = vld [vmem:[#allocation2 + $0xc] sm:$0xf]
        %s971 = scalar_lea.vmem %s1, 56
        %v972 = vld [vmem:[%s971] sm:$0xff]
        %v975 = vcombine.high %v969, %v969
        %976 = vrot.lane.b32.xlu0 %v969, 112
        %v977 = vpop.permute.xlu0 %976
        %978 = vrot.lane.b32.xlu0 %v975, 112
        %v979 = vpop.permute.xlu0 %978
        %980 = vrot.lane.b32.xlu0 %v970, 112
        %v981 = vpop.permute.xlu0 %980
        %vm982 = vcmask 916480
        %v983 = vsel %vm982, %v977, %v979
        %v984 = vsel %vm982, %v979, %v981
        %v986 = vsel %vm295, %v972, 0
        %v988 = vsel %vm299, %v983, 0
        %v990 = vsel %vm299, %v984, 0
        %992 = vmatprep.subr.mxu0 %v990
        %993 = vmatpush1.msra.mxu0 %v988
        %994 = vmatprep.subr.mxu0 0.0
        %995 = vmatpush1.msra.mxu0 0.0
        %996 = vmatprep.subr.mxu0 0.0
        %997 = vmatpush1.msra.mxu0 0.0
        %998 = vmatprep.subr.mxu0 0.0
        %999 = vmatpush1.msra.mxu0 0.0
        %1000 = vmatprep.subr.mxu0 0.0
        %1001 = vmatpush1.msra.mxu0 0.0
        %1002 = vmatprep.subr.mxu0 0.0
        %1003 = vmatpush1.msra.mxu0 0.0
        %1004 = vmatprep.subr.mxu0 0.0
        %1005 = vmatpush1.msra.mxu0 0.0
        %1006 = vmatprep.subr.mxu0 0.0
        %1007 = vmatpush1.msra.mxu0 0.0
        %1008 = vmatprep.subr.mxu0 0.0
        %1009 = vmatpush1.msra.mxu0 0.0
        %1010 = vmatprep.subr.mxu0 0.0
        %1011 = vmatpush1.msra.mxu0 0.0
        %1012 = vmatprep.subr.mxu0 0.0
        %1013 = vmatpush1.msra.mxu0 0.0
        %1014 = vmatprep.subr.mxu0 0.0
        %1015 = vmatpush1.msra.mxu0 0.0
        %1016 = vmatprep.subr.mxu0 0.0
        %1017 = vmatpush1.msra.mxu0 0.0
        %1018 = vmatprep.subr.mxu0 0.0
        %1019 = vmatpush1.msra.mxu0 0.0
        %1020 = vmatprep.subr.mxu0 0.0
        %1021 = vmatpush1.msra.mxu0 0.0
        %1022 = vmatprep.subr.mxu0 0.0
        %1023 = vmatpush1.msra.mxu0 0.0
        %1024 = vmatprep.subr.mxu0 0.0
        %1025 = vmatpush1.msra.mxu0 0.0
        %1026 = vmatprep.subr.mxu0 0.0
        %1027 = vmatpush1.msra.mxu0 0.0
        %1028 = vmatprep.subr.mxu0 0.0
        %1029 = vmatpush1.msra.mxu0 0.0
        %1030 = vmatprep.subr.mxu0 0.0
        %1031 = vmatpush1.msra.mxu0 0.0
        %1032 = vmatprep.subr.mxu0 0.0
        %1033 = vmatpush1.msra.mxu0 0.0
        %1034 = vmatprep.subr.mxu0 0.0
        %1035 = vmatpush1.msra.mxu0 0.0
        %1036 = vmatprep.subr.mxu0 0.0
        %1037 = vmatpush1.msra.mxu0 0.0
        %1038 = vmatprep.subr.mxu0 0.0
        %1039 = vmatpush1.msra.mxu0 0.0
        %1040 = vmatprep.subr.mxu0 0.0
        %1041 = vmatpush1.msra.mxu0 0.0
        %1042 = vmatprep.subr.mxu0 0.0
        %1043 = vmatpush1.msra.mxu0 0.0
        %1044 = vmatprep.subr.mxu0 0.0
        %1045 = vmatpush1.msra.mxu0 0.0
        %1046 = vmatprep.subr.mxu0 0.0
        %1047 = vmatpush1.msra.mxu0 0.0
        %1048 = vmatprep.subr.mxu0 0.0
        %1049 = vmatpush1.msra.mxu0 0.0
        %1050 = vmatprep.subr.mxu0 0.0
        %1051 = vmatpush1.msra.mxu0 0.0
        %1052 = vmatprep.subr.mxu0 0.0
        %1053 = vmatpush1.msra.mxu0 0.0
        %1054 = vmatprep.subr.mxu0 0.0
        %1055 = vmatpush1.msra.mxu0 0.0
        %1056 = vmatprep.mubr.f32.mxu0 0.0
        %1057 = vmatmul.mubr.f32.gmra.mrb[0].mxu0 %v986
        %v1058 = vpop.f32.mrb[0].mxu0
        %v1059 = vadd.f32 0.0, %v1058
        %v1060 = vpop.f32.mrb[0].mxu0
        %v1061 = vadd.f32 0.0, %v1060
        %1062 = vdwg.mxu0
        %v1063 = vadd.f32 %v967, %v1059
        %v1064 = vadd.f32 %v968, %v1061
        %v1065 = vld [vmem:[#allocation2 + $0x4] sm:$0xff]
        %v1066 = vld [vmem:[#allocation2 + $0xc] sm:$0xf]
        %1067 = vrot.lane.b32.xlu0 %v469, 17
        %v1068 = vpop.permute.xlu0 %1067
        %v1069 = vrot.slane %v1068, 4
        %v1070 = vsel %vm384, %v1069, %v1068
        %v1073 = vmul.f32 %v1065, %v1070
        %v1074 = vmul.f32 %v1066, %v1069
        %s1075 = scalar_lea.vmem %s1, 64
        %v1076 = vld [vmem:[%s1075] sm:$0xff]
        %v1079 = vcombine.high %v1073, %v1073
        %1080 = vrot.lane.b32.xlu0 %v1073, 111
        %v1081 = vpop.permute.xlu0 %1080
        %1082 = vrot.lane.b32.xlu0 %v1079, 111
        %v1083 = vpop.permute.xlu0 %1082
        %1084 = vrot.lane.b32.xlu0 %v1074, 111
        %v1085 = vpop.permute.xlu0 %1084
        %v1086 = vsel %vm274, %v1081, %v1083
        %v1087 = vsel %vm274, %v1083, %v1085
        %v1089 = vsel %vm295, %v1076, 0
        %v1091 = vsel %vm299, %v1086, 0
        %v1093 = vsel %vm299, %v1087, 0
        %1095 = vmatprep.subr.mxu0 %v1093
        %1096 = vmatpush1.msra.mxu0 %v1091
        %1097 = vmatprep.subr.mxu0 0.0
        %1098 = vmatpush1.msra.mxu0 0.0
        %1099 = vmatprep.subr.mxu0 0.0
        %1100 = vmatpush1.msra.mxu0 0.0
        %1101 = vmatprep.subr.mxu0 0.0
        %1102 = vmatpush1.msra.mxu0 0.0
        %1103 = vmatprep.subr.mxu0 0.0
        %1104 = vmatpush1.msra.mxu0 0.0
        %1105 = vmatprep.subr.mxu0 0.0
        %1106 = vmatpush1.msra.mxu0 0.0
        %1107 = vmatprep.subr.mxu0 0.0
        %1108 = vmatpush1.msra.mxu0 0.0
        %1109 = vmatprep.subr.mxu0 0.0
        %1110 = vmatpush1.msra.mxu0 0.0
        %1111 = vmatprep.subr.mxu0 0.0
        %1112 = vmatpush1.msra.mxu0 0.0
        %1113 = vmatprep.subr.mxu0 0.0
        %1114 = vmatpush1.msra.mxu0 0.0
        %1115 = vmatprep.subr.mxu0 0.0
        %1116 = vmatpush1.msra.mxu0 0.0
        %1117 = vmatprep.subr.mxu0 0.0
        %1118 = vmatpush1.msra.mxu0 0.0
        %1119 = vmatprep.subr.mxu0 0.0
        %1120 = vmatpush1.msra.mxu0 0.0
        %1121 = vmatprep.subr.mxu0 0.0
        %1122 = vmatpush1.msra.mxu0 0.0
        %1123 = vmatprep.subr.mxu0 0.0
        %1124 = vmatpush1.msra.mxu0 0.0
        %1125 = vmatprep.subr.mxu0 0.0
        %1126 = vmatpush1.msra.mxu0 0.0
        %1127 = vmatprep.subr.mxu0 0.0
        %1128 = vmatpush1.msra.mxu0 0.0
        %1129 = vmatprep.subr.mxu0 0.0
        %1130 = vmatpush1.msra.mxu0 0.0
        %1131 = vmatprep.subr.mxu0 0.0
        %1132 = vmatpush1.msra.mxu0 0.0
        %1133 = vmatprep.subr.mxu0 0.0
        %1134 = vmatpush1.msra.mxu0 0.0
        %1135 = vmatprep.subr.mxu0 0.0
        %1136 = vmatpush1.msra.mxu0 0.0
        %1137 = vmatprep.subr.mxu0 0.0
        %1138 = vmatpush1.msra.mxu0 0.0
        %1139 = vmatprep.subr.mxu0 0.0
        %1140 = vmatpush1.msra.mxu0 0.0
        %1141 = vmatprep.subr.mxu0 0.0
        %1142 = vmatpush1.msra.mxu0 0.0
        %1143 = vmatprep.subr.mxu0 0.0
        %1144 = vmatpush1.msra.mxu0 0.0
        %1145 = vmatprep.subr.mxu0 0.0
        %1146 = vmatpush1.msra.mxu0 0.0
        %1147 = vmatprep.subr.mxu0 0.0
        %1148 = vmatpush1.msra.mxu0 0.0
        %1149 = vmatprep.subr.mxu0 0.0
        %1150 = vmatpush1.msra.mxu0 0.0
        %1151 = vmatprep.subr.mxu0 0.0
        %1152 = vmatpush1.msra.mxu0 0.0
        %1153 = vmatprep.subr.mxu0 0.0
        %1154 = vmatpush1.msra.mxu0 0.0
        %1155 = vmatprep.subr.mxu0 0.0
        %1156 = vmatpush1.msra.mxu0 0.0
        %1157 = vmatprep.subr.mxu0 0.0
        %1158 = vmatpush1.msra.mxu0 0.0
        %1159 = vmatprep.mubr.f32.mxu0 0.0
        %1160 = vmatmul.mubr.f32.gmra.mrb[0].mxu0 %v1089
        %v1161 = vpop.f32.mrb[0].mxu0
        %v1162 = vadd.f32 0.0, %v1161
        %v1163 = vpop.f32.mrb[0].mxu0
        %v1164 = vadd.f32 0.0, %v1163
        %1165 = vdwg.mxu0
        %v1166 = vadd.f32 %v1063, %v1162
        %v1167 = vadd.f32 %v1064, %v1164
        %v1168 = vld [vmem:[%s2] sm:$0xff]
        %1170 = vset.pattern.permute.xlu0 0
        %1171 = vperm.xlu0 %1170, %v1168
        %v1172 = vpop.permute.xlu0 %1171
        %v1174 = vadd.f32 %v1166, %v1172
        %v1175 = vadd.f32 %v1167, %v1172
        %v1176 = vmul.f32 %v1174, 0.2
        %v1177 = vmul.f32 %v1175, 0.2
        %v1178 = vmax.f32 %v1174, %v1176
        %v1179 = vmax.f32 %v1175, %v1177
        %1180 = vst [vmem:[#allocation3] sm:$0xff] 0.0
        %1181 = vst [vmem:[#allocation3 + $0x8] sm:$0xff] 0.0
        %1182 = vst [vmem:[#allocation3 + $0x10] sm:$0xff] 0.0
        %1183 = vst [vmem:[#allocation3 + $0x18] sm:$0xff] 0.0
        %1184 = vst [vmem:[#allocation3 + $0x8] sm:$0xff] %v1178
        %1185 = vst [vmem:[#allocation3 + $0x10] sm:$0xff] %v1179
        %v1186 = vld [vmem:[#allocation3] sm:$0xff]
        %v1187 = vld [vmem:[#allocation3 + $0x8] sm:$0xff]
        %v1188 = vld [vmem:[#allocation3 + $0x10] sm:$0xff]
        %1189 = vrot.lane.b32.xlu0 %v254, 111
        %v1190 = vpop.permute.xlu0 %1189
        %1191 = vrot.lane.b32.xlu0 %v255, 111
        %v1192 = vpop.permute.xlu0 %1191
        %v1193 = vsel %vm274, %v1190, %v1192
        %v1197 = vmul.f32 %v1186, %v1190
        %v1198 = vmul.f32 %v1187, %v1193
        %v1199 = vmul.f32 %v1188, %v1192
        %v1200 = vld [vmem:[%s3] sm:$0xff]
        %s1201 = scalar_lea.vmem %s3, 8
        %v1202 = vld [vmem:[%s1201] sm:$0xff]
        %1206 = vrot.lane.b32.xlu0 %v1186, 16
        %v1207 = vpop.permute.xlu0 %1206
        %1208 = vrot.lane.b32.xlu0 %v1187, 16
        %v1209 = vpop.permute.xlu0 %1208
        %1210 = vrot.lane.b32.xlu0 %v1188, 16
        %v1211 = vpop.permute.xlu0 %1210
        %v1212 = vsel %vm292, %v1207, %v1209
        %v1213 = vsel %vm292, %v1209, %v1211
        %vm1216 = vcmask 64512
        %v1218 = vsel %vm1216, %v1202, 0
        %1220 = vmatprep.subr.mxu0 %v1213
        %1221 = vmatpush1.msra.mxu0 %v1212
        %1222 = vmatprep.subr.mxu0 0.0
        %1223 = vmatpush1.msra.mxu0 0.0
        %1224 = vmatprep.subr.mxu0 0.0
        %1225 = vmatpush1.msra.mxu0 0.0
        %1226 = vmatprep.subr.mxu0 0.0
        %1227 = vmatpush1.msra.mxu0 0.0
        %1228 = vmatprep.subr.mxu0 0.0
        %1229 = vmatpush1.msra.mxu0 0.0
        %1230 = vmatprep.subr.mxu0 0.0
        %1231 = vmatpush1.msra.mxu0 0.0
        %1232 = vmatprep.subr.mxu0 0.0
        %1233 = vmatpush1.msra.mxu0 0.0
        %1234 = vmatprep.subr.mxu0 0.0
        %1235 = vmatpush1.msra.mxu0 0.0
        %1236 = vmatprep.subr.mxu0 0.0
        %1237 = vmatpush1.msra.mxu0 0.0
        %1238 = vmatprep.subr.mxu0 0.0
        %1239 = vmatpush1.msra.mxu0 0.0
        %1240 = vmatprep.subr.mxu0 0.0
        %1241 = vmatpush1.msra.mxu0 0.0
        %1242 = vmatprep.subr.mxu0 0.0
        %1243 = vmatpush1.msra.mxu0 0.0
        %1244 = vmatprep.subr.mxu0 0.0
        %1245 = vmatpush1.msra.mxu0 0.0
        %1246 = vmatprep.subr.mxu0 0.0
        %1247 = vmatpush1.msra.mxu0 0.0
        %1248 = vmatprep.subr.mxu0 0.0
        %1249 = vmatpush1.msra.mxu0 0.0
        %1250 = vmatprep.subr.mxu0 0.0
        %1251 = vmatpush1.msra.mxu0 0.0
        %1252 = vmatprep.subr.mxu0 0.0
        %1253 = vmatpush1.msra.mxu0 0.0
        %1254 = vmatprep.subr.mxu0 0.0
        %1255 = vmatpush1.msra.mxu0 0.0
        %1256 = vmatprep.subr.mxu0 0.0
        %1257 = vmatpush1.msra.mxu0 0.0
        %1258 = vmatprep.subr.mxu0 0.0
        %1259 = vmatpush1.msra.mxu0 0.0
        %1260 = vmatprep.subr.mxu0 0.0
        %1261 = vmatpush1.msra.mxu0 0.0
        %1262 = vmatprep.subr.mxu0 0.0
        %1263 = vmatpush1.msra.mxu0 0.0
        %1264 = vmatprep.subr.mxu0 0.0
        %1265 = vmatpush1.msra.mxu0 0.0
        %1266 = vmatprep.subr.mxu0 0.0
        %1267 = vmatpush1.msra.mxu0 0.0
        %1268 = vmatprep.subr.mxu0 0.0
        %1269 = vmatpush1.msra.mxu0 0.0
        %1270 = vmatprep.subr.mxu0 0.0
        %1271 = vmatpush1.msra.mxu0 0.0
        %1272 = vmatprep.subr.mxu0 0.0
        %1273 = vmatpush1.msra.mxu0 0.0
        %1274 = vmatprep.subr.mxu0 0.0
        %1275 = vmatpush1.msra.mxu0 0.0
        %1276 = vmatprep.subr.mxu0 0.0
        %1277 = vmatpush1.msra.mxu0 0.0
        %1278 = vmatprep.subr.mxu0 0.0
        %1279 = vmatpush1.msra.mxu0 0.0
        %1280 = vmatprep.subr.mxu0 0.0
        %1281 = vmatpush1.msra.mxu0 0.0
        %1282 = vmatprep.subr.mxu0 0.0
        %1283 = vmatpush1.msra.mxu0 0.0
        %1284 = vmatprep.mubr.f32.mxu0 0.0
        %1285 = vmatmul.mubr.f32.gmra.mrb[0].mxu0 %v1218
        %v1286 = vpop.f32.mrb[0].mxu0
        %v1287 = vadd.f32 0.0, %v1286
        %v1288 = vpop.f32.mrb[0].mxu0
        %v1289 = vadd.f32 0.0, %v1288
        %1290 = vdwg.mxu0
        %1294 = vrot.lane.b32.xlu0 %v1197, 17
        %v1295 = vpop.permute.xlu0 %1294
        %1296 = vrot.lane.b32.xlu0 %v1198, 17
        %v1297 = vpop.permute.xlu0 %1296
        %1298 = vrot.lane.b32.xlu0 %v1199, 17
        %v1299 = vpop.permute.xlu0 %1298
        %v1300 = vsel %vm384, %v1295, %v1297
        %v1301 = vsel %vm384, %v1297, %v1299
        %v1305 = vsel %vm1216, %v1200, 0
        %1307 = vmatprep.subr.mxu0 %v1301
        %1308 = vmatpush1.msra.mxu0 %v1300
        %1309 = vmatprep.subr.mxu0 0.0
        %1310 = vmatpush1.msra.mxu0 0.0
        %1311 = vmatprep.subr.mxu0 0.0
        %1312 = vmatpush1.msra.mxu0 0.0
        %1313 = vmatprep.subr.mxu0 0.0
        %1314 = vmatpush1.msra.mxu0 0.0
        %1315 = vmatprep.subr.mxu0 0.0
        %1316 = vmatpush1.msra.mxu0 0.0
        %1317 = vmatprep.subr.mxu0 0.0
        %1318 = vmatpush1.msra.mxu0 0.0
        %1319 = vmatprep.subr.mxu0 0.0
        %1320 = vmatpush1.msra.mxu0 0.0
        %1321 = vmatprep.subr.mxu0 0.0
        %1322 = vmatpush1.msra.mxu0 0.0
        %1323 = vmatprep.subr.mxu0 0.0
        %1324 = vmatpush1.msra.mxu0 0.0
        %1325 = vmatprep.subr.mxu0 0.0
        %1326 = vmatpush1.msra.mxu0 0.0
        %1327 = vmatprep.subr.mxu0 0.0
        %1328 = vmatpush1.msra.mxu0 0.0
        %1329 = vmatprep.subr.mxu0 0.0
        %1330 = vmatpush1.msra.mxu0 0.0
        %1331 = vmatprep.subr.mxu0 0.0
        %1332 = vmatpush1.msra.mxu0 0.0
        %1333 = vmatprep.subr.mxu0 0.0
        %1334 = vmatpush1.msra.mxu0 0.0
        %1335 = vmatprep.subr.mxu0 0.0
        %1336 = vmatpush1.msra.mxu0 0.0
        %1337 = vmatprep.subr.mxu0 0.0
        %1338 = vmatpush1.msra.mxu0 0.0
        %1339 = vmatprep.subr.mxu0 0.0
        %1340 = vmatpush1.msra.mxu0 0.0
        %1341 = vmatprep.subr.mxu0 0.0
        %1342 = vmatpush1.msra.mxu0 0.0
        %1343 = vmatprep.subr.mxu0 0.0
        %1344 = vmatpush1.msra.mxu0 0.0
        %1345 = vmatprep.subr.mxu0 0.0
        %1346 = vmatpush1.msra.mxu0 0.0
        %1347 = vmatprep.subr.mxu0 0.0
        %1348 = vmatpush1.msra.mxu0 0.0
        %1349 = vmatprep.subr.mxu0 0.0
        %1350 = vmatpush1.msra.mxu0 0.0
        %1351 = vmatprep.subr.mxu0 0.0
        %1352 = vmatpush1.msra.mxu0 0.0
        %1353 = vmatprep.subr.mxu0 0.0
        %1354 = vmatpush1.msra.mxu0 0.0
        %1355 = vmatprep.subr.mxu0 0.0
        %1356 = vmatpush1.msra.mxu0 0.0
        %1357 = vmatprep.subr.mxu0 0.0
        %1358 = vmatpush1.msra.mxu0 0.0
        %1359 = vmatprep.subr.mxu0 0.0
        %1360 = vmatpush1.msra.mxu0 0.0
        %1361 = vmatprep.subr.mxu0 0.0
        %1362 = vmatpush1.msra.mxu0 0.0
        %1363 = vmatprep.subr.mxu0 0.0
        %1364 = vmatpush1.msra.mxu0 0.0
        %1365 = vmatprep.subr.mxu0 0.0
        %1366 = vmatpush1.msra.mxu0 0.0
        %1367 = vmatprep.subr.mxu0 0.0
        %1368 = vmatpush1.msra.mxu0 0.0
        %1369 = vmatprep.subr.mxu0 0.0
        %1370 = vmatpush1.msra.mxu0 0.0
        %1371 = vmatprep.mubr.f32.mxu0 0.0
        %1372 = vmatmul.mubr.f32.gmra.mrb[0].mxu0 %v1305
        %v1373 = vpop.f32.mrb[0].mxu0
        %v1374 = vadd.f32 %v1287, %v1373
        %v1375 = vpop.f32.mrb[0].mxu0
        %v1376 = vadd.f32 %v1289, %v1375
        %1377 = vdwg.mxu0
        %1378 = vrot.lane.b32.xlu0 %v260, 113
        %v1379 = vpop.permute.xlu0 %1378
        %1380 = vrot.lane.b32.xlu0 %v261, 113
        %v1381 = vpop.permute.xlu0 %1380
        %v1382 = vsel %vm473, %v1379, %v1381
        %v1386 = vmul.f32 %v1186, %v1379
        %v1387 = vmul.f32 %v1187, %v1382
        %v1388 = vmul.f32 %v1188, %v1381
        %s1389 = scalar_lea.vmem %s3, 16
        %v1390 = vld [vmem:[%s1389] sm:$0xff]
        %1394 = vrot.lane.b32.xlu0 %v1386, 15
        %v1395 = vpop.permute.xlu0 %1394
        %1396 = vrot.lane.b32.xlu0 %v1387, 15
        %v1397 = vpop.permute.xlu0 %1396
        %1398 = vrot.lane.b32.xlu0 %v1388, 15
        %v1399 = vpop.permute.xlu0 %1398
        %v1400 = vsel %vm490, %v1395, %v1397
        %v1401 = vsel %vm490, %v1397, %v1399
        %v1405 = vsel %vm1216, %v1390, 0
        %1407 = vmatprep.subr.mxu0 %v1401
        %1408 = vmatpush1.msra.mxu0 %v1400
        %1409 = vmatprep.subr.mxu0 0.0
        %1410 = vmatpush1.msra.mxu0 0.0
        %1411 = vmatprep.subr.mxu0 0.0
        %1412 = vmatpush1.msra.mxu0 0.0
        %1413 = vmatprep.subr.mxu0 0.0
        %1414 = vmatpush1.msra.mxu0 0.0
        %1415 = vmatprep.subr.mxu0 0.0
        %1416 = vmatpush1.msra.mxu0 0.0
        %1417 = vmatprep.subr.mxu0 0.0
        %1418 = vmatpush1.msra.mxu0 0.0
        %1419 = vmatprep.subr.mxu0 0.0
        %1420 = vmatpush1.msra.mxu0 0.0
        %1421 = vmatprep.subr.mxu0 0.0
        %1422 = vmatpush1.msra.mxu0 0.0
        %1423 = vmatprep.subr.mxu0 0.0
        %1424 = vmatpush1.msra.mxu0 0.0
        %1425 = vmatprep.subr.mxu0 0.0
        %1426 = vmatpush1.msra.mxu0 0.0
        %1427 = vmatprep.subr.mxu0 0.0
        %1428 = vmatpush1.msra.mxu0 0.0
        %1429 = vmatprep.subr.mxu0 0.0
        %1430 = vmatpush1.msra.mxu0 0.0
        %1431 = vmatprep.subr.mxu0 0.0
        %1432 = vmatpush1.msra.mxu0 0.0
        %1433 = vmatprep.subr.mxu0 0.0
        %1434 = vmatpush1.msra.mxu0 0.0
        %1435 = vmatprep.subr.mxu0 0.0
        %1436 = vmatpush1.msra.mxu0 0.0
        %1437 = vmatprep.subr.mxu0 0.0
        %1438 = vmatpush1.msra.mxu0 0.0
        %1439 = vmatprep.subr.mxu0 0.0
        %1440 = vmatpush1.msra.mxu0 0.0
        %1441 = vmatprep.subr.mxu0 0.0
        %1442 = vmatpush1.msra.mxu0 0.0
        %1443 = vmatprep.subr.mxu0 0.0
        %1444 = vmatpush1.msra.mxu0 0.0
        %1445 = vmatprep.subr.mxu0 0.0
        %1446 = vmatpush1.msra.mxu0 0.0
        %1447 = vmatprep.subr.mxu0 0.0
        %1448 = vmatpush1.msra.mxu0 0.0
        %1449 = vmatprep.subr.mxu0 0.0
        %1450 = vmatpush1.msra.mxu0 0.0
        %1451 = vmatprep.subr.mxu0 0.0
        %1452 = vmatpush1.msra.mxu0 0.0
        %1453 = vmatprep.subr.mxu0 0.0
        %1454 = vmatpush1.msra.mxu0 0.0
        %1455 = vmatprep.subr.mxu0 0.0
        %1456 = vmatpush1.msra.mxu0 0.0
        %1457 = vmatprep.subr.mxu0 0.0
        %1458 = vmatpush1.msra.mxu0 0.0
        %1459 = vmatprep.subr.mxu0 0.0
        %1460 = vmatpush1.msra.mxu0 0.0
        %1461 = vmatprep.subr.mxu0 0.0
        %1462 = vmatpush1.msra.mxu0 0.0
        %1463 = vmatprep.subr.mxu0 0.0
        %1464 = vmatpush1.msra.mxu0 0.0
        %1465 = vmatprep.subr.mxu0 0.0
        %1466 = vmatpush1.msra.mxu0 0.0
        %1467 = vmatprep.subr.mxu0 0.0
        %1468 = vmatpush1.msra.mxu0 0.0
        %1469 = vmatprep.subr.mxu0 0.0
        %1470 = vmatpush1.msra.mxu0 0.0
        %1471 = vmatprep.mubr.f32.mxu0 0.0
        %1472 = vmatmul.mubr.f32.gmra.mrb[0].mxu0 %v1405
        %v1473 = vpop.f32.mrb[0].mxu0
        %v1474 = vadd.f32 0.0, %v1473
        %v1475 = vpop.f32.mrb[0].mxu0
        %v1476 = vadd.f32 0.0, %v1475
        %1477 = vdwg.mxu0
        %v1478 = vadd.f32 %v1374, %v1474
        %v1479 = vadd.f32 %v1376, %v1476
        %1480 = vrot.lane.b32.xlu0 %v254, 127
        %v1481 = vpop.permute.xlu0 %1480
        %1482 = vrot.lane.b32.xlu0 %v255, 127
        %v1483 = vpop.permute.xlu0 %1482
        %v1484 = vsel %vm578, %v1481, %v1483
        %v1488 = vmul.f32 %v1186, %v1481
        %v1489 = vmul.f32 %v1187, %v1484
        %v1490 = vmul.f32 %v1188, %v1483
        %s1491 = scalar_lea.vmem %s3, 24
        %v1492 = vld [vmem:[%s1491] sm:$0xff]
        %1496 = vrot.lane.b32.xlu0 %v1488, 1
        %v1497 = vpop.permute.xlu0 %1496
        %1498 = vrot.lane.b32.xlu0 %v1489, 1
        %v1499 = vpop.permute.xlu0 %1498
        %1500 = vrot.lane.b32.xlu0 %v1490, 1
        %v1501 = vpop.permute.xlu0 %1500
        %v1502 = vsel %vm595, %v1497, %v1499
        %v1503 = vsel %vm595, %v1499, %v1501
        %v1507 = vsel %vm1216, %v1492, 0
        %1509 = vmatprep.subr.mxu0 %v1503
        %1510 = vmatpush1.msra.mxu0 %v1502
        %1511 = vmatprep.subr.mxu0 0.0
        %1512 = vmatpush1.msra.mxu0 0.0
        %1513 = vmatprep.subr.mxu0 0.0
        %1514 = vmatpush1.msra.mxu0 0.0
        %1515 = vmatprep.subr.mxu0 0.0
        %1516 = vmatpush1.msra.mxu0 0.0
        %1517 = vmatprep.subr.mxu0 0.0
        %1518 = vmatpush1.msra.mxu0 0.0
        %1519 = vmatprep.subr.mxu0 0.0
        %1520 = vmatpush1.msra.mxu0 0.0
        %1521 = vmatprep.subr.mxu0 0.0
        %1522 = vmatpush1.msra.mxu0 0.0
        %1523 = vmatprep.subr.mxu0 0.0
        %1524 = vmatpush1.msra.mxu0 0.0
        %1525 = vmatprep.subr.mxu0 0.0
        %1526 = vmatpush1.msra.mxu0 0.0
        %1527 = vmatprep.subr.mxu0 0.0
        %1528 = vmatpush1.msra.mxu0 0.0
        %1529 = vmatprep.subr.mxu0 0.0
        %1530 = vmatpush1.msra.mxu0 0.0
        %1531 = vmatprep.subr.mxu0 0.0
        %1532 = vmatpush1.msra.mxu0 0.0
        %1533 = vmatprep.subr.mxu0 0.0
        %1534 = vmatpush1.msra.mxu0 0.0
        %1535 = vmatprep.subr.mxu0 0.0
        %1536 = vmatpush1.msra.mxu0 0.0
        %1537 = vmatprep.subr.mxu0 0.0
        %1538 = vmatpush1.msra.mxu0 0.0
        %1539 = vmatprep.subr.mxu0 0.0
        %1540 = vmatpush1.msra.mxu0 0.0
        %1541 = vmatprep.subr.mxu0 0.0
        %1542 = vmatpush1.msra.mxu0 0.0
        %1543 = vmatprep.subr.mxu0 0.0
        %1544 = vmatpush1.msra.mxu0 0.0
        %1545 = vmatprep.subr.mxu0 0.0
        %1546 = vmatpush1.msra.mxu0 0.0
        %1547 = vmatprep.subr.mxu0 0.0
        %1548 = vmatpush1.msra.mxu0 0.0
        %1549 = vmatprep.subr.mxu0 0.0
        %1550 = vmatpush1.msra.mxu0 0.0
        %1551 = vmatprep.subr.mxu0 0.0
        %1552 = vmatpush1.msra.mxu0 0.0
        %1553 = vmatprep.subr.mxu0 0.0
        %1554 = vmatpush1.msra.mxu0 0.0
        %1555 = vmatprep.subr.mxu0 0.0
        %1556 = vmatpush1.msra.mxu0 0.0
        %1557 = vmatprep.subr.mxu0 0.0
        %1558 = vmatpush1.msra.mxu0 0.0
        %1559 = vmatprep.subr.mxu0 0.0
        %1560 = vmatpush1.msra.mxu0 0.0
        %1561 = vmatprep.subr.mxu0 0.0
        %1562 = vmatpush1.msra.mxu0 0.0
        %1563 = vmatprep.subr.mxu0 0.0
        %1564 = vmatpush1.msra.mxu0 0.0
        %1565 = vmatprep.subr.mxu0 0.0
        %1566 = vmatpush1.msra.mxu0 0.0
        %1567 = vmatprep.subr.mxu0 0.0
        %1568 = vmatpush1.msra.mxu0 0.0
        %1569 = vmatprep.subr.mxu0 0.0
        %1570 = vmatpush1.msra.mxu0 0.0
        %1571 = vmatprep.subr.mxu0 0.0
        %1572 = vmatpush1.msra.mxu0 0.0
        %1573 = vmatprep.mubr.f32.mxu0 0.0
        %1574 = vmatmul.mubr.f32.gmra.mrb[0].mxu0 %v1507
        %v1575 = vpop.f32.mrb[0].mxu0
        %v1576 = vadd.f32 0.0, %v1575
        %v1577 = vpop.f32.mrb[0].mxu0
        %v1578 = vadd.f32 0.0, %v1577
        %1579 = vdwg.mxu0
        %v1580 = vadd.f32 %v1478, %v1576
        %v1581 = vadd.f32 %v1479, %v1578
        %s1582 = scalar_lea.vmem %s3, 32
        %v1583 = vld [vmem:[%s1582] sm:$0xff]
        %v1585 = vsel %vm1216, %v1583, 0
        %1587 = vmatprep.subr.mxu0 %v1188
        %1588 = vmatpush1.msra.mxu0 %v1187
        %1589 = vmatprep.subr.mxu0 0.0
        %1590 = vmatpush1.msra.mxu0 0.0
        %1591 = vmatprep.subr.mxu0 0.0
        %1592 = vmatpush1.msra.mxu0 0.0
        %1593 = vmatprep.subr.mxu0 0.0
        %1594 = vmatpush1.msra.mxu0 0.0
        %1595 = vmatprep.subr.mxu0 0.0
        %1596 = vmatpush1.msra.mxu0 0.0
        %1597 = vmatprep.subr.mxu0 0.0
        %1598 = vmatpush1.msra.mxu0 0.0
        %1599 = vmatprep.subr.mxu0 0.0
        %1600 = vmatpush1.msra.mxu0 0.0
        %1601 = vmatprep.subr.mxu0 0.0
        %1602 = vmatpush1.msra.mxu0 0.0
        %1603 = vmatprep.subr.mxu0 0.0
        %1604 = vmatpush1.msra.mxu0 0.0
        %1605 = vmatprep.subr.mxu0 0.0
        %1606 = vmatpush1.msra.mxu0 0.0
        %1607 = vmatprep.subr.mxu0 0.0
        %1608 = vmatpush1.msra.mxu0 0.0
        %1609 = vmatprep.subr.mxu0 0.0
        %1610 = vmatpush1.msra.mxu0 0.0
        %1611 = vmatprep.subr.mxu0 0.0
        %1612 = vmatpush1.msra.mxu0 0.0
        %1613 = vmatprep.subr.mxu0 0.0
        %1614 = vmatpush1.msra.mxu0 0.0
        %1615 = vmatprep.subr.mxu0 0.0
        %1616 = vmatpush1.msra.mxu0 0.0
        %1617 = vmatprep.subr.mxu0 0.0
        %1618 = vmatpush1.msra.mxu0 0.0
        %1619 = vmatprep.subr.mxu0 0.0
        %1620 = vmatpush1.msra.mxu0 0.0
        %1621 = vmatprep.subr.mxu0 0.0
        %1622 = vmatpush1.msra.mxu0 0.0
        %1623 = vmatprep.subr.mxu0 0.0
        %1624 = vmatpush1.msra.mxu0 0.0
        %1625 = vmatprep.subr.mxu0 0.0
        %1626 = vmatpush1.msra.mxu0 0.0
        %1627 = vmatprep.subr.mxu0 0.0
        %1628 = vmatpush1.msra.mxu0 0.0
        %1629 = vmatprep.subr.mxu0 0.0
        %1630 = vmatpush1.msra.mxu0 0.0
        %1631 = vmatprep.subr.mxu0 0.0
        %1632 = vmatpush1.msra.mxu0 0.0
        %1633 = vmatprep.subr.mxu0 0.0
        %1634 = vmatpush1.msra.mxu0 0.0
        %1635 = vmatprep.subr.mxu0 0.0
        %1636 = vmatpush1.msra.mxu0 0.0
        %1637 = vmatprep.subr.mxu0 0.0
        %1638 = vmatpush1.msra.mxu0 0.0
        %1639 = vmatprep.subr.mxu0 0.0
        %1640 = vmatpush1.msra.mxu0 0.0
        %1641 = vmatprep.subr.mxu0 0.0
        %1642 = vmatpush1.msra.mxu0 0.0
        %1643 = vmatprep.subr.mxu0 0.0
        %1644 = vmatpush1.msra.mxu0 0.0
        %1645 = vmatprep.subr.mxu0 0.0
        %1646 = vmatpush1.msra.mxu0 0.0
        %1647 = vmatprep.subr.mxu0 0.0
        %1648 = vmatpush1.msra.mxu0 0.0
        %1649 = vmatprep.subr.mxu0 0.0
        %1650 = vmatpush1.msra.mxu0 0.0
        %1651 = vmatprep.mubr.f32.mxu0 0.0
        %1652 = vmatmul.mubr.f32.gmra.mrb[0].mxu0 %v1585
        %v1653 = vpop.f32.mrb[0].mxu0
        %v1654 = vadd.f32 0.0, %v1653
        %v1655 = vpop.f32.mrb[0].mxu0
        %v1656 = vadd.f32 0.0, %v1655
        %1657 = vdwg.mxu0
        %v1658 = vadd.f32 %v1580, %v1654
        %v1659 = vadd.f32 %v1581, %v1656
        %v1660 = vld [vmem:[#allocation3 + $0x8] sm:$0xff]
        %v1661 = vld [vmem:[#allocation3 + $0x10] sm:$0xff]
        %v1662 = vld [vmem:[#allocation3 + $0x18] sm:$0xff]
        %1663 = vrot.lane.b32.xlu0 %v260, 1
        %v1664 = vpop.permute.xlu0 %1663
        %1665 = vrot.lane.b32.xlu0 %v261, 1
        %v1666 = vpop.permute.xlu0 %1665
        %v1667 = vsel %vm595, %v1664, %v1666
        %v1671 = vmul.f32 %v1660, %v1664
        %v1672 = vmul.f32 %v1661, %v1667
        %v1673 = vmul.f32 %v1662, %v1666
        %s1674 = scalar_lea.vmem %s3, 40
        %v1675 = vld [vmem:[%s1674] sm:$0xff]
        %1679 = vrot.lane.b32.xlu0 %v1671, 127
        %v1680 = vpop.permute.xlu0 %1679
        %1681 = vrot.lane.b32.xlu0 %v1672, 127
        %v1682 = vpop.permute.xlu0 %1681
        %1683 = vrot.lane.b32.xlu0 %v1673, 127
        %v1684 = vpop.permute.xlu0 %1683
        %v1685 = vsel %vm578, %v1680, %v1682
        %v1686 = vsel %vm578, %v1682, %v1684
        %v1690 = vsel %vm1216, %v1675, 0
        %1692 = vmatprep.subr.mxu0 %v1686
        %1693 = vmatpush1.msra.mxu0 %v1685
        %1694 = vmatprep.subr.mxu0 0.0
        %1695 = vmatpush1.msra.mxu0 0.0
        %1696 = vmatprep.subr.mxu0 0.0
        %1697 = vmatpush1.msra.mxu0 0.0
        %1698 = vmatprep.subr.mxu0 0.0
        %1699 = vmatpush1.msra.mxu0 0.0
        %1700 = vmatprep.subr.mxu0 0.0
        %1701 = vmatpush1.msra.mxu0 0.0
        %1702 = vmatprep.subr.mxu0 0.0
        %1703 = vmatpush1.msra.mxu0 0.0
        %1704 = vmatprep.subr.mxu0 0.0
        %1705 = vmatpush1.msra.mxu0 0.0
        %1706 = vmatprep.subr.mxu0 0.0
        %1707 = vmatpush1.msra.mxu0 0.0
        %1708 = vmatprep.subr.mxu0 0.0
        %1709 = vmatpush1.msra.mxu0 0.0
        %1710 = vmatprep.subr.mxu0 0.0
        %1711 = vmatpush1.msra.mxu0 0.0
        %1712 = vmatprep.subr.mxu0 0.0
        %1713 = vmatpush1.msra.mxu0 0.0
        %1714 = vmatprep.subr.mxu0 0.0
        %1715 = vmatpush1.msra.mxu0 0.0
        %1716 = vmatprep.subr.mxu0 0.0
        %1717 = vmatpush1.msra.mxu0 0.0
        %1718 = vmatprep.subr.mxu0 0.0
        %1719 = vmatpush1.msra.mxu0 0.0
        %1720 = vmatprep.subr.mxu0 0.0
        %1721 = vmatpush1.msra.mxu0 0.0
        %1722 = vmatprep.subr.mxu0 0.0
        %1723 = vmatpush1.msra.mxu0 0.0
        %1724 = vmatprep.subr.mxu0 0.0
        %1725 = vmatpush1.msra.mxu0 0.0
        %1726 = vmatprep.subr.mxu0 0.0
        %1727 = vmatpush1.msra.mxu0 0.0
        %1728 = vmatprep.subr.mxu0 0.0
        %1729 = vmatpush1.msra.mxu0 0.0
        %1730 = vmatprep.subr.mxu0 0.0
        %1731 = vmatpush1.msra.mxu0 0.0
        %1732 = vmatprep.subr.mxu0 0.0
        %1733 = vmatpush1.msra.mxu0 0.0
        %1734 = vmatprep.subr.mxu0 0.0
        %1735 = vmatpush1.msra.mxu0 0.0
        %1736 = vmatprep.subr.mxu0 0.0
        %1737 = vmatpush1.msra.mxu0 0.0
        %1738 = vmatprep.subr.mxu0 0.0
        %1739 = vmatpush1.msra.mxu0 0.0
        %1740 = vmatprep.subr.mxu0 0.0
        %1741 = vmatpush1.msra.mxu0 0.0
        %1742 = vmatprep.subr.mxu0 0.0
        %1743 = vmatpush1.msra.mxu0 0.0
        %1744 = vmatprep.subr.mxu0 0.0
        %1745 = vmatpush1.msra.mxu0 0.0
        %1746 = vmatprep.subr.mxu0 0.0
        %1747 = vmatpush1.msra.mxu0 0.0
        %1748 = vmatprep.subr.mxu0 0.0
        %1749 = vmatpush1.msra.mxu0 0.0
        %1750 = vmatprep.subr.mxu0 0.0
        %1751 = vmatpush1.msra.mxu0 0.0
        %1752 = vmatprep.subr.mxu0 0.0
        %1753 = vmatpush1.msra.mxu0 0.0
        %1754 = vmatprep.subr.mxu0 0.0
        %1755 = vmatpush1.msra.mxu0 0.0
        %1756 = vmatprep.mubr.f32.mxu0 0.0
        %1757 = vmatmul.mubr.f32.gmra.mrb[0].mxu0 %v1690
        %v1758 = vpop.f32.mrb[0].mxu0
        %v1759 = vadd.f32 0.0, %v1758
        %v1760 = vpop.f32.mrb[0].mxu0
        %v1761 = vadd.f32 0.0, %v1760
        %1762 = vdwg.mxu0
        %v1763 = vadd.f32 %v1658, %v1759
        %v1764 = vadd.f32 %v1659, %v1761
        %1765 = vrot.lane.b32.xlu0 %v254, 15
        %v1766 = vpop.permute.xlu0 %1765
        %1767 = vrot.lane.b32.xlu0 %v255, 15
        %v1768 = vpop.permute.xlu0 %1767
        %v1769 = vsel %vm490, %v1766, %v1768
        %v1773 = vmul.f32 %v1660, %v1766
        %v1774 = vmul.f32 %v1661, %v1769
        %v1775 = vmul.f32 %v1662, %v1768
        %s1776 = scalar_lea.vmem %s3, 48
        %v1777 = vld [vmem:[%s1776] sm:$0xff]
        %1781 = vrot.lane.b32.xlu0 %v1773, 113
        %v1782 = vpop.permute.xlu0 %1781
        %1783 = vrot.lane.b32.xlu0 %v1774, 113
        %v1784 = vpop.permute.xlu0 %1783
        %1785 = vrot.lane.b32.xlu0 %v1775, 113
        %v1786 = vpop.permute.xlu0 %1785
        %v1787 = vsel %vm473, %v1782, %v1784
        %v1788 = vsel %vm473, %v1784, %v1786
        %v1792 = vsel %vm1216, %v1777, 0
        %1794 = vmatprep.subr.mxu0 %v1788
        %1795 = vmatpush1.msra.mxu0 %v1787
        %1796 = vmatprep.subr.mxu0 0.0
        %1797 = vmatpush1.msra.mxu0 0.0
        %1798 = vmatprep.subr.mxu0 0.0
        %1799 = vmatpush1.msra.mxu0 0.0
        %1800 = vmatprep.subr.mxu0 0.0
        %1801 = vmatpush1.msra.mxu0 0.0
        %1802 = vmatprep.subr.mxu0 0.0
        %1803 = vmatpush1.msra.mxu0 0.0
        %1804 = vmatprep.subr.mxu0 0.0
        %1805 = vmatpush1.msra.mxu0 0.0
        %1806 = vmatprep.subr.mxu0 0.0
        %1807 = vmatpush1.msra.mxu0 0.0
        %1808 = vmatprep.subr.mxu0 0.0
        %1809 = vmatpush1.msra.mxu0 0.0
        %1810 = vmatprep.subr.mxu0 0.0
        %1811 = vmatpush1.msra.mxu0 0.0
        %1812 = vmatprep.subr.mxu0 0.0
        %1813 = vmatpush1.msra.mxu0 0.0
        %1814 = vmatprep.subr.mxu0 0.0
        %1815 = vmatpush1.msra.mxu0 0.0
        %1816 = vmatprep.subr.mxu0 0.0
        %1817 = vmatpush1.msra.mxu0 0.0
        %1818 = vmatprep.subr.mxu0 0.0
        %1819 = vmatpush1.msra.mxu0 0.0
        %1820 = vmatprep.subr.mxu0 0.0
        %1821 = vmatpush1.msra.mxu0 0.0
        %1822 = vmatprep.subr.mxu0 0.0
        %1823 = vmatpush1.msra.mxu0 0.0
        %1824 = vmatprep.subr.mxu0 0.0
        %1825 = vmatpush1.msra.mxu0 0.0
        %1826 = vmatprep.subr.mxu0 0.0
        %1827 = vmatpush1.msra.mxu0 0.0
        %1828 = vmatprep.subr.mxu0 0.0
        %1829 = vmatpush1.msra.mxu0 0.0
        %1830 = vmatprep.subr.mxu0 0.0
        %1831 = vmatpush1.msra.mxu0 0.0
        %1832 = vmatprep.subr.mxu0 0.0
        %1833 = vmatpush1.msra.mxu0 0.0
        %1834 = vmatprep.subr.mxu0 0.0
        %1835 = vmatpush1.msra.mxu0 0.0
        %1836 = vmatprep.subr.mxu0 0.0
        %1837 = vmatpush1.msra.mxu0 0.0
        %1838 = vmatprep.subr.mxu0 0.0
        %1839 = vmatpush1.msra.mxu0 0.0
        %1840 = vmatprep.subr.mxu0 0.0
        %1841 = vmatpush1.msra.mxu0 0.0
        %1842 = vmatprep.subr.mxu0 0.0
        %1843 = vmatpush1.msra.mxu0 0.0
        %1844 = vmatprep.subr.mxu0 0.0
        %1845 = vmatpush1.msra.mxu0 0.0
        %1846 = vmatprep.subr.mxu0 0.0
        %1847 = vmatpush1.msra.mxu0 0.0
        %1848 = vmatprep.subr.mxu0 0.0
        %1849 = vmatpush1.msra.mxu0 0.0
        %1850 = vmatprep.subr.mxu0 0.0
        %1851 = vmatpush1.msra.mxu0 0.0
        %1852 = vmatprep.subr.mxu0 0.0
        %1853 = vmatpush1.msra.mxu0 0.0
        %1854 = vmatprep.subr.mxu0 0.0
        %1855 = vmatpush1.msra.mxu0 0.0
        %1856 = vmatprep.subr.mxu0 0.0
        %1857 = vmatpush1.msra.mxu0 0.0
        %1858 = vmatprep.mubr.f32.mxu0 0.0
        %1859 = vmatmul.mubr.f32.gmra.mrb[0].mxu0 %v1792
        %v1860 = vpop.f32.mrb[0].mxu0
        %v1861 = vadd.f32 0.0, %v1860
        %v1862 = vpop.f32.mrb[0].mxu0
        %v1863 = vadd.f32 0.0, %v1862
        %1864 = vdwg.mxu0
        %v1865 = vadd.f32 %v1763, %v1861
        %v1866 = vadd.f32 %v1764, %v1863
        %s1867 = scalar_lea.vmem %s3, 56
        %v1868 = vld [vmem:[%s1867] sm:$0xff]
        %1872 = vrot.lane.b32.xlu0 %v1660, 112
        %v1873 = vpop.permute.xlu0 %1872
        %1874 = vrot.lane.b32.xlu0 %v1661, 112
        %v1875 = vpop.permute.xlu0 %1874
        %1876 = vrot.lane.b32.xlu0 %v1662, 112
        %v1877 = vpop.permute.xlu0 %1876
        %v1878 = vsel %vm982, %v1873, %v1875
        %v1879 = vsel %vm982, %v1875, %v1877
        %v1883 = vsel %vm1216, %v1868, 0
        %1885 = vmatprep.subr.mxu0 %v1879
        %1886 = vmatpush1.msra.mxu0 %v1878
        %1887 = vmatprep.subr.mxu0 0.0
        %1888 = vmatpush1.msra.mxu0 0.0
        %1889 = vmatprep.subr.mxu0 0.0
        %1890 = vmatpush1.msra.mxu0 0.0
        %1891 = vmatprep.subr.mxu0 0.0
        %1892 = vmatpush1.msra.mxu0 0.0
        %1893 = vmatprep.subr.mxu0 0.0
        %1894 = vmatpush1.msra.mxu0 0.0
        %1895 = vmatprep.subr.mxu0 0.0
        %1896 = vmatpush1.msra.mxu0 0.0
        %1897 = vmatprep.subr.mxu0 0.0
        %1898 = vmatpush1.msra.mxu0 0.0
        %1899 = vmatprep.subr.mxu0 0.0
        %1900 = vmatpush1.msra.mxu0 0.0
        %1901 = vmatprep.subr.mxu0 0.0
        %1902 = vmatpush1.msra.mxu0 0.0
        %1903 = vmatprep.subr.mxu0 0.0
        %1904 = vmatpush1.msra.mxu0 0.0
        %1905 = vmatprep.subr.mxu0 0.0
        %1906 = vmatpush1.msra.mxu0 0.0
        %1907 = vmatprep.subr.mxu0 0.0
        %1908 = vmatpush1.msra.mxu0 0.0
        %1909 = vmatprep.subr.mxu0 0.0
        %1910 = vmatpush1.msra.mxu0 0.0
        %1911 = vmatprep.subr.mxu0 0.0
        %1912 = vmatpush1.msra.mxu0 0.0
        %1913 = vmatprep.subr.mxu0 0.0
        %1914 = vmatpush1.msra.mxu0 0.0
        %1915 = vmatprep.subr.mxu0 0.0
        %1916 = vmatpush1.msra.mxu0 0.0
        %1917 = vmatprep.subr.mxu0 0.0
        %1918 = vmatpush1.msra.mxu0 0.0
        %1919 = vmatprep.subr.mxu0 0.0
        %1920 = vmatpush1.msra.mxu0 0.0
        %1921 = vmatprep.subr.mxu0 0.0
        %1922 = vmatpush1.msra.mxu0 0.0
        %1923 = vmatprep.subr.mxu0 0.0
        %1924 = vmatpush1.msra.mxu0 0.0
        %1925 = vmatprep.subr.mxu0 0.0
        %1926 = vmatpush1.msra.mxu0 0.0
        %1927 = vmatprep.subr.mxu0 0.0
        %1928 = vmatpush1.msra.mxu0 0.0
        %1929 = vmatprep.subr.mxu0 0.0
        %1930 = vmatpush1.msra.mxu0 0.0
        %1931 = vmatprep.subr.mxu0 0.0
        %1932 = vmatpush1.msra.mxu0 0.0
        %1933 = vmatprep.subr.mxu0 0.0
        %1934 = vmatpush1.msra.mxu0 0.0
        %1935 = vmatprep.subr.mxu0 0.0
        %1936 = vmatpush1.msra.mxu0 0.0
        %1937 = vmatprep.subr.mxu0 0.0
        %1938 = vmatpush1.msra.mxu0 0.0
        %1939 = vmatprep.subr.mxu0 0.0
        %1940 = vmatpush1.msra.mxu0 0.0
        %1941 = vmatprep.subr.mxu0 0.0
        %1942 = vmatpush1.msra.mxu0 0.0
        %1943 = vmatprep.subr.mxu0 0.0
        %1944 = vmatpush1.msra.mxu0 0.0
        %1945 = vmatprep.subr.mxu0 0.0
        %1946 = vmatpush1.msra.mxu0 0.0
        %1947 = vmatprep.subr.mxu0 0.0
        %1948 = vmatpush1.msra.mxu0 0.0
        %1949 = vmatprep.mubr.f32.mxu0 0.0
        %1950 = vmatmul.mubr.f32.gmra.mrb[0].mxu0 %v1883
        %v1951 = vpop.f32.mrb[0].mxu0
        %v1952 = vadd.f32 0.0, %v1951
        %v1953 = vpop.f32.mrb[0].mxu0
        %v1954 = vadd.f32 0.0, %v1953
        %1955 = vdwg.mxu0
        %v1956 = vadd.f32 %v1865, %v1952
        %v1957 = vadd.f32 %v1866, %v1954
        %1958 = vrot.lane.b32.xlu0 %v260, 17
        %v1959 = vpop.permute.xlu0 %1958
        %1960 = vrot.lane.b32.xlu0 %v261, 17
        %v1961 = vpop.permute.xlu0 %1960
        %v1962 = vsel %vm384, %v1959, %v1961
        %v1966 = vmul.f32 %v1660, %v1959
        %v1967 = vmul.f32 %v1661, %v1962
        %v1968 = vmul.f32 %v1662, %v1961
        %s1969 = scalar_lea.vmem %s3, 64
        %v1970 = vld [vmem:[%s1969] sm:$0xff]
        %1974 = vrot.lane.b32.xlu0 %v1966, 111
        %v1975 = vpop.permute.xlu0 %1974
        %1976 = vrot.lane.b32.xlu0 %v1967, 111
        %v1977 = vpop.permute.xlu0 %1976
        %1978 = vrot.lane.b32.xlu0 %v1968, 111
        %v1979 = vpop.permute.xlu0 %1978
        %v1980 = vsel %vm274, %v1975, %v1977
        %v1981 = vsel %vm274, %v1977, %v1979
        %v1985 = vsel %vm1216, %v1970, 0
        %1987 = vmatprep.subr.mxu0 %v1981
        %1988 = vmatpush1.msra.mxu0 %v1980
        %1989 = vmatprep.subr.mxu0 0.0
        %1990 = vmatpush1.msra.mxu0 0.0
        %1991 = vmatprep.subr.mxu0 0.0
        %1992 = vmatpush1.msra.mxu0 0.0
        %1993 = vmatprep.subr.mxu0 0.0
        %1994 = vmatpush1.msra.mxu0 0.0
        %1995 = vmatprep.subr.mxu0 0.0
        %1996 = vmatpush1.msra.mxu0 0.0
        %1997 = vmatprep.subr.mxu0 0.0
        %1998 = vmatpush1.msra.mxu0 0.0
        %1999 = vmatprep.subr.mxu0 0.0
        %2000 = vmatpush1.msra.mxu0 0.0
        %2001 = vmatprep.subr.mxu0 0.0
        %2002 = vmatpush1.msra.mxu0 0.0
        %2003 = vmatprep.subr.mxu0 0.0
        %2004 = vmatpush1.msra.mxu0 0.0
        %2005 = vmatprep.subr.mxu0 0.0
        %2006 = vmatpush1.msra.mxu0 0.0
        %2007 = vmatprep.subr.mxu0 0.0
        %2008 = vmatpush1.msra.mxu0 0.0
        %2009 = vmatprep.subr.mxu0 0.0
        %2010 = vmatpush1.msra.mxu0 0.0
        %2011 = vmatprep.subr.mxu0 0.0
        %2012 = vmatpush1.msra.mxu0 0.0
        %2013 = vmatprep.subr.mxu0 0.0
        %2014 = vmatpush1.msra.mxu0 0.0
        %2015 = vmatprep.subr.mxu0 0.0
        %2016 = vmatpush1.msra.mxu0 0.0
        %2017 = vmatprep.subr.mxu0 0.0
        %2018 = vmatpush1.msra.mxu0 0.0
        %2019 = vmatprep.subr.mxu0 0.0
        %2020 = vmatpush1.msra.mxu0 0.0
        %2021 = vmatprep.subr.mxu0 0.0
        %2022 = vmatpush1.msra.mxu0 0.0
        %2023 = vmatprep.subr.mxu0 0.0
        %2024 = vmatpush1.msra.mxu0 0.0
        %2025 = vmatprep.subr.mxu0 0.0
        %2026 = vmatpush1.msra.mxu0 0.0
        %2027 = vmatprep.subr.mxu0 0.0
        %2028 = vmatpush1.msra.mxu0 0.0
        %2029 = vmatprep.subr.mxu0 0.0
        %2030 = vmatpush1.msra.mxu0 0.0
        %2031 = vmatprep.subr.mxu0 0.0
        %2032 = vmatpush1.msra.mxu0 0.0
        %2033 = vmatprep.subr.mxu0 0.0
        %2034 = vmatpush1.msra.mxu0 0.0
        %2035 = vmatprep.subr.mxu0 0.0
        %2036 = vmatpush1.msra.mxu0 0.0
        %2037 = vmatprep.subr.mxu0 0.0
        %2038 = vmatpush1.msra.mxu0 0.0
        %2039 = vmatprep.subr.mxu0 0.0
        %2040 = vmatpush1.msra.mxu0 0.0
        %2041 = vmatprep.subr.mxu0 0.0
        %2042 = vmatpush1.msra.mxu0 0.0
        %2043 = vmatprep.subr.mxu0 0.0
        %2044 = vmatpush1.msra.mxu0 0.0
        %2045 = vmatprep.subr.mxu0 0.0
        %2046 = vmatpush1.msra.mxu0 0.0
        %2047 = vmatprep.subr.mxu0 0.0
        %2048 = vmatpush1.msra.mxu0 0.0
        %2049 = vmatprep.subr.mxu0 0.0
        %2050 = vmatpush1.msra.mxu0 0.0
        %2051 = vmatprep.mubr.f32.mxu0 0.0
        %2052 = vmatmul.mubr.f32.gmra.mrb[0].mxu0 %v1985
        %v2053 = vpop.f32.mrb[0].mxu0
        %v2054 = vadd.f32 0.0, %v2053
        %v2055 = vpop.f32.mrb[0].mxu0
        %v2056 = vadd.f32 0.0, %v2055
        %2057 = vdwg.mxu0
        %v2058 = vadd.f32 %v1956, %v2054
        %v2059 = vadd.f32 %v1957, %v2056
        %v2060 = vld [vmem:[%s4] sm:$0xff]
        %2062 = vset.pattern.permute.xlu0 0
        %2063 = vperm.xlu0 %2062, %v2060
        %v2064 = vpop.permute.xlu0 %2063
        %v2066 = vadd.f32 %v2058, %v2064
        %v2067 = vadd.f32 %v2059, %v2064
        %v2068 = vmul.f32 %v2066, 0.2
        %v2069 = vmul.f32 %v2067, 0.2
        %v2070 = vmax.f32 %v2066, %v2068
        %v2071 = vmax.f32 %v2067, %v2069
        %2072 = vst [vmem:[%s217] sm:$0xff] %v2070
        %2073 = vst [vmem:[%s217 + $0x8] sm:$0xff] %v2071
        %s2074 = sand.u32 %s137, 1
        %s2075 = scalar_lea.sflag [#allocation5], %s2074
        %s2076 = sand.u32 %s137, 1
        %s2077 = smul.addr %s2076, 16
        %s2078 = scalar_lea.vmem [#allocation4], %s2077
        // Predicated region
        $region41: #{tpu_custom_call.1} parent=39 // pred_check
          %p2079 = pneg %p147
        $region42: #{tpu_custom_call.1} parent=39 // pred_check_branch
          %2081 = sbr.rel (%p2079) target = $region44
        $region43: #{tpu_custom_call.1} parent=39 // pred_region
          %s2083 = ssub.s32 256, 256
          %2084 = vsyncadd %s2075, %s2083
          %s2085 = smul.addr %s19, 2
          %s2086 = smul.addr %s2085, 128
          %s2087 = scalar_lea.hbm %s5, %s2086
          %s2089 = sshll.u32 %s2078, 4
          %s2090 = int_to_ptr.vmem [resolvable:$true] %s2089
          %2092 = dma.vmem_to_hbm [thread:$0]  %s2090, 256, %s2087, %s2075
        $region44: #{tpu_custom_call.1} parent=39 // pred_fallthru
          _
      $region40: #{tpu_custom_call.1} parent=5 // pred_fallthru
        _
      %p2093 = scmp.le.s32.totalorder 2, %s14
      // Predicated region
      $region45: #{tpu_custom_call.1} parent=5 // pred_check
        %p2094 = pneg %p2093
      $region46: #{tpu_custom_call.1} parent=5 // pred_check_branch
        %2096 = sbr.rel (%p2094) target = $region48
      $region47: #{tpu_custom_call.1} parent=5 // pred_region
        %s2097 = ssub.s32 %s14, 2
        // Predicated region
        $region49: #{tpu_custom_call.1} parent=47 // pred_check
          %p2098 = pneg %p153
        $region50: #{tpu_custom_call.1} parent=47 // pred_check_branch
          %2100 = sbr.rel (%p2098) target = $region52
        $region51: #{tpu_custom_call.1} parent=47 // pred_region
          %s2101 = sand.u32 %s138, 1
          %s2102 = scalar_lea.sflag [#allocation5], %s2101
          %s2103 = sand.u32 %s138, 1
          %s2104 = smul.addr %s2103, 16
          %s2105 = scalar_lea.vmem [#allocation4], %s2104
          %2106 = dma.done %s2102, 256
        $region52: #{tpu_custom_call.1} parent=47 // pred_fallthru
          _
      $region48: #{tpu_custom_call.1} parent=5 // pred_fallthru
        _
    $region6: #{tpu_custom_call.1} parent=1 // loop_footer
      %s18 = sadd.s32 1, %s14
    $region7: #{tpu_custom_call.1} parent=1 // loop_footer_branch
      %13 = sbr.rel target = $region3
    $region8: #{tpu_custom_call.1} parent=1 // loop_exit
      _
    %2107 = vsyncpa [#allocation5], 1
    %s2108 = scalar_lea.sflag [#allocation5], 1
    %2109 = vsyncpa %s2108, 1

</llo_original>
